<compile_context>
chip_gen: v7x
topology: tpu7x:2x2x1
jax: 0.10.0
libtpu: 0.0.40
codegen_flags: <defaults>
</compile_context>

<pallas_src>
import functools

import jax
import jax.numpy as jnp
from jax.experimental import pallas as pl
from jax.experimental.pallas import tpu as pltpu


def _up_res_block2_kernel(
    x_ref,        # (1, L, C)     one sample, channels-last, compute dtype
    w_up_ref,     # (C, 2C)       [W[:, :, 0] | W[:, :, 1]] of ConvTranspose1d
    b_up_ref,     # (1, 2C)       f32, bias duplicated for both parities
    w_dw_ref,     # (K, C)        f32 depthwise weight (tap, channel)
    b_dw_ref,     # (1, C)        f32
    ln_g_ref,     # (1, C)        f32
    ln_b_ref,     # (1, C)        f32
    w1_ref,       # (C, H)        compute dtype
    b1_ref,       # (1, H)        f32
    grn_g_ref,    # (1, H)        f32
    grn_b_ref,    # (1, H)        f32
    w2res_ref,    # (H + C, Co)   compute dtype, [w_pw2 ; w_res]
    b2res_ref,    # (1, Co)       f32, b_pw2 + b_res
    o_ref,        # (1, L, 2*Co)  [:, :, :Co] = even positions, [:, :, Co:] = odd
    ypad_ref,     # VMEM scratch (2, L + 2*PAD, C), compute dtype
    *,
    K: int,
    PAD: int,
):
    L, C = x_ref.shape[1], x_ref.shape[2]
    f32 = jnp.float32
    cdt = ypad_ref.dtype

    # Zero only the pad margins (interior is fully overwritten below).  Done
    # every grid step: it is tiny (4*PAD rows) and, unlike a program_id()==0
    # guard, stays correct when the "parallel" batch axis is sharded across
    # TensorCores (each core has its own scratch instance).
    zeros_margin = jnp.zeros((PAD, C), dtype=cdt)
    for j in range(2):
        ypad_ref[j, :PAD, :] = zeros_margin
        ypad_ref[j, PAD + L:, :] = zeros_margin

    # ---- ConvTranspose1d(C, C, kernel=2, stride=2) as ONE matmul ------------
    # out[:, 2t + k] = x[:, t] @ W[:, :, k] + b; lanes [:C] = even stream,
    # lanes [C:] = odd stream.
    x = x_ref[0]                                                     # (L, C)
    y = jnp.dot(x, w_up_ref[...], preferred_element_type=f32) + b_up_ref[...]
    y = y.astype(cdt)                                                # (L, 2C)
    y0 = y[:, :C]
    y1 = y[:, C:]
    ypad_ref[0, PAD:PAD + L, :] = y0
    ypad_ref[1, PAD:PAD + L, :] = y1
    y_all = jnp.concatenate([y0, y1], axis=0)            # (2L, C) rows[:L]=even

    # ---- Depthwise Conv1d(kernel=K, padding='same') on the interleaved ------
    # signal: output position s = 2r + j reads interleaved offset d = j - P + k
    # which lives in stream d % 2 at row r + d // 2 (zeros outside [0, L)).
    # Each distinct shifted (L, C) slab is loaded once and reused by both
    # parities: K + 1 loads instead of 2*K.
    P = (K - 1) // 2
    w_dw = w_dw_ref[...]                                             # (K, C) f32
    b_dw = b_dw_ref[...]                                             # (1, C) f32
    slabs = {}
    for d in range(-P, P + 2):
        src = d % 2
        sh = d // 2
        slabs[d] = ypad_ref[src, PAD + sh:PAD + sh + L, :]
    dw = []
    for j in range(2):                       # static loop: output parity
        acc = b_dw
        for k in range(K):                   # static loop: conv taps
            acc = acc + w_dw[k:k + 1, :] * slabs[j - P + k]
        dw.append(acc)                                               # (L, C) f32
    dw_all = jnp.concatenate(dw, axis=0)                             # (2L, C) f32

    # ---- LayerNorm (channels, f32 stats) -> Linear(C, H) -> GELU ------------
    mu = jnp.mean(dw_all, axis=-1, keepdims=True)
    var = jnp.mean(jnp.square(dw_all - mu), axis=-1, keepdims=True)
    t = (dw_all - mu) * jax.lax.rsqrt(var + 1e-6) * ln_g_ref[...] + ln_b_ref[...]
    h = jnp.dot(t.astype(cdt), w1_ref[...], preferred_element_type=f32)
    h = h + b1_ref[...]
    h = jax.nn.gelu(h, approximate=True)                             # (2L, H) f32

    # ---- GRN: global response norm over all 2L positions (f32 stats) --------
    gx = jnp.sqrt(jnp.sum(jnp.square(h), axis=0, keepdims=True))     # (1, H)
    nx = gx / (jnp.mean(gx, axis=-1, keepdims=True) + 1e-6)
    h = grn_g_ref[...] * (h * nx) + grn_b_ref[...] + h               # (2L, H) f32

    # ---- Linear(H, Co) + 1x1 residual fused into ONE matmul ------------------
    hy = jnp.concatenate([h.astype(cdt), y_all], axis=-1)            # (2L, H+C)
    out = jnp.dot(hy, w2res_ref[...], preferred_element_type=f32) + b2res_ref[...]

    # ---- Lane-dense full-block store ----------------------------------------
    o_ref[0] = jnp.concatenate([out[:L, :], out[L:, :]], axis=-1).astype(o_ref.dtype)


def up_res_block2(x, params, *, kernel_size: int, compute_dtype=jnp.bfloat16):
    """Pallas forward of UpResBlock2.  x: (N, C_in, L) -> (N, C_out, 2L)."""
    assert kernel_size % 2 == 1, "odd kernel_size assumed (ConvNeXt default 7)"
    N, C, L = x.shape
    K = kernel_size
    Co = params["w_pw2"].shape[1]
    H = params["w_pw1"].shape[1]
    P = (K - 1) // 2
    margin = (P + 1) // 2                    # max |row shift| used by dwconv
    PAD = max(8, ((margin + 7) // 8) * 8)    # sublane-aligned pad margin

    f32 = jnp.float32
    cdt = compute_dtype

    x_nlc = jnp.transpose(x, (0, 2, 1)).astype(cdt)     # NCL -> NLC (plumbing)

    # Wrapper-side weight fusion / casts (matmul operands -> compute dtype).
    w_up_cat = jnp.concatenate([params["w_up"][0], params["w_up"][1]], axis=1).astype(cdt)
    b_up_cat = jnp.concatenate([params["b_up"], params["b_up"]], axis=-1).astype(f32)
    w2res = jnp.concatenate([params["w_pw2"], params["w_res"]], axis=0).astype(cdt)
    b2res = (params["b_pw2"] + params["b_res"]).astype(f32)

    weights = (
        w_up_cat, b_up_cat,
        params["w_dw"].astype(f32), params["b_dw"].astype(f32),
        params["ln_gamma"].astype(f32), params["ln_beta"].astype(f32),
        params["w_pw1"].astype(cdt), params["b_pw1"].astype(f32),
        params["grn_gamma"].astype(f32), params["grn_beta"].astype(f32),
        w2res, b2res,
    )

    kernel = functools.partial(_up_res_block2_kernel, K=K, PAD=PAD)

    # Explicit VMEM budget (v7x has only 64 MiB physical VMEM per core).
    cbytes = x_nlc.dtype.itemsize
    weight_bytes = sum(int(w.size) * w.dtype.itemsize for w in weights)
    est = (
        2 * L * C * cbytes                          # double-buffered input block
        + 2 * L * 2 * Co * x.dtype.itemsize         # double-buffered output block
        + 2 * (L + 2 * PAD) * C * cbytes            # ypad scratch
        + weight_bytes
        + 4 * 2 * L * (2 * C + 2 * H + Co) * 4      # live intermediates (w/ margin)
    )
    vmem_limit = int(min(60 * 2 ** 20, max(32 * 2 ** 20, est)))

    # Weights: whole-array VMEM residents (no per-step double-buffered copies).
    vmem_resident = pl.BlockSpec(memory_space=pltpu.MemorySpace.VMEM)

    out = pl.pallas_call(
        kernel,
        out_shape=jax.ShapeDtypeStruct((N, L, 2 * Co), x.dtype),
        grid=(N,),
        in_specs=[pl.BlockSpec((1, L, C), lambda b: (b, 0, 0))]
        + [vmem_resident] * len(weights),
        out_specs=pl.BlockSpec((1, L, 2 * Co), lambda b: (b, 0, 0)),
        scratch_shapes=[pltpu.VMEM((2, L + 2 * PAD, C), cdt)],
        compiler_params=pltpu.CompilerParams(
            dimension_semantics=("parallel",),
            vmem_limit_bytes=vmem_limit,
        ),
    )(x_nlc, *weights)

    # (N, L, 2*Co) --reshape--> interleaved (N, 2L, Co) --transpose--> NCL.
    return jnp.transpose(out.reshape(N, 2 * L, Co), (0, 2, 1))


def _reference(x, params, *, kernel_size: int):
    """Pure-JAX f32 reference of the same forward pass (correctness check)."""
    N, C, L = x.shape
    K = kernel_size
    P = (K - 1) // 2
    xt = jnp.transpose(x, (0, 2, 1)).astype(jnp.float32)             # (N, L, C)
    y0 = xt @ params["w_up"][0] + params["b_up"]
    y1 = xt @ params["w_up"][1] + params["b_up"]
    u = jnp.stack([y0, y1], axis=2).reshape(N, 2 * L, C)             # interleaved
    up = jnp.pad(u, ((0, 0), (P, K - 1 - P), (0, 0)))
    dw = params["b_dw"]
    for k in range(K):
        dw = dw + up[:, k:k + 2 * L, :] * params["w_dw"][k][None, None, :]
    mu = jnp.mean(dw, axis=-1, keepdims=True)
    var = jnp.mean(jnp.square(dw - mu), axis=-1, keepdims=True)
    h = (dw - mu) / jnp.sqrt(var + 1e-6) * params["ln_gamma"] + params["ln_beta"]
    h = h @ params["w_pw1"] + params["b_pw1"]
    h = jax.nn.gelu(h, approximate=True)
    gx = jnp.sqrt(jnp.sum(jnp.square(h), axis=1, keepdims=True))
    nx = gx / (jnp.mean(gx, axis=-1, keepdims=True) + 1e-6)
    h = params["grn_gamma"] * (h * nx) + params["grn_beta"] + h
    out = h @ params["w_pw2"] + params["b_pw2"]
    out = out + u @ params["w_res"] + params["b_res"]
    return jnp.transpose(out, (0, 2, 1))                             # (N, Co, 2L)


if __name__ == "__main__":
    N, C_IN, C_OUT, L, K = 2, 4, 8, 16, 7
    H = 4 * C_IN

    key = jax.random.PRNGKey(0)
    keys = jax.random.split(key, 16)
    s = 0.25
    params = {
        "w_up": jax.random.normal(keys[0], (2, C_IN, C_IN), jnp.float32) * s,
        "b_up": jax.random.normal(keys[1], (1, C_IN), jnp.float32) * s,
        "w_dw": jax.random.normal(keys[2], (K, C_IN), jnp.float32) * s,
        "b_dw": jax.random.normal(keys[3], (1, C_IN), jnp.float32) * s,
        "ln_gamma": 1.0 + jax.random.normal(keys[4], (1, C_IN), jnp.float32) * 0.05,
        "ln_beta": jax.random.normal(keys[5], (1, C_IN), jnp.float32) * 0.05,
        "w_pw1": jax.random.normal(keys[6], (C_IN, H), jnp.float32) * s,
        "b_pw1": jax.random.normal(keys[7], (1, H), jnp.float32) * s,
        "grn_gamma": jax.random.normal(keys[8], (1, H), jnp.float32) * 0.1,
        "grn_beta": jax.random.normal(keys[9], (1, H), jnp.float32) * 0.1,
        "w_pw2": jax.random.normal(keys[10], (H, C_OUT), jnp.float32) * s,
        "b_pw2": jax.random.normal(keys[11], (1, C_OUT), jnp.float32) * s,
        "w_res": jax.random.normal(keys[12], (C_IN, C_OUT), jnp.float32) * s,
        "b_res": jax.random.normal(keys[13], (1, C_OUT), jnp.float32) * s,
    }
    x = jax.random.normal(keys[14], (N, C_IN, L), jnp.float32)

    y_ref = _reference(x, params, kernel_size=K)

    # Exact-precision path: proves the fused kernel matches the module math.
    y_f32 = up_res_block2(x, params, kernel_size=K, compute_dtype=jnp.float32)
    jax.block_until_ready(y_f32)
    assert y_f32.shape == (N, C_OUT, 2 * L), y_f32.shape
    assert y_f32.dtype == x.dtype
    err_f32 = float(jnp.max(jnp.abs(y_f32 - y_ref)))
    assert err_f32 < 5e-4, f"f32 path max abs err vs reference: {err_f32}"

    # Default fast path: bf16 MXU operands, f32 accumulation / LN / GRN stats.
    y_bf16 = up_res_block2(x, params, kernel_size=K)
    jax.block_until_ready(y_bf16)
    assert y_bf16.shape == (N, C_OUT, 2 * L), y_bf16.shape
    assert y_bf16.dtype == x.dtype
    err_bf16 = float(jnp.max(jnp.abs(y_bf16 - y_ref)))
    assert err_bf16 < 1e-1, f"bf16 path max abs err vs f32 reference: {err_bf16}"

    print("KERNEL_OK")
</pallas_src>

<mosaic_0001>
module attributes {stable_mosaic.version = 11 : i64} {
  func.func @_up_res_block2_kernel(%arg0: i32, %arg1: memref<1x16x4xf32, #tpu.memory_space<vmem>>, %arg2: memref<4x8xf32, #tpu.memory_space<vmem>>, %arg3: memref<1x8xf32, #tpu.memory_space<vmem>>, %arg4: memref<7x4xf32, #tpu.memory_space<vmem>>, %arg5: memref<1x4xf32, #tpu.memory_space<vmem>>, %arg6: memref<1x4xf32, #tpu.memory_space<vmem>>, %arg7: memref<1x4xf32, #tpu.memory_space<vmem>>, %arg8: memref<4x16xf32, #tpu.memory_space<vmem>>, %arg9: memref<1x16xf32, #tpu.memory_space<vmem>>, %arg10: memref<1x16xf32, #tpu.memory_space<vmem>>, %arg11: memref<1x16xf32, #tpu.memory_space<vmem>>, %arg12: memref<20x8xf32, #tpu.memory_space<vmem>>, %arg13: memref<1x8xf32, #tpu.memory_space<vmem>>, %arg14: memref<1x16x16xf32, #tpu.memory_space<vmem>>, %arg15: memref<2x32x4xf32, #tpu.memory_space<vmem>>) attributes {dimension_semantics = [#tpu.dimension_semantics<parallel>], iteration_bounds = array<i64: 2>, scalar_prefetch = 0 : i64, scratch_operands = 1 : i64, tpu.core_type = #tpu.core_type<tc>, window_params = [{transform_indices = @transform_0, window_bounds = array<i64: 1, 16, 4>}, {pipeline_mode = #tpu.pipeline_mode<synchronous>, transform_indices = @transform_1, window_bounds = array<i64: 4, 8>}, {pipeline_mode = #tpu.pipeline_mode<synchronous>, transform_indices = @transform_2, window_bounds = array<i64: 1, 8>}, {pipeline_mode = #tpu.pipeline_mode<synchronous>, transform_indices = @transform_3, window_bounds = array<i64: 7, 4>}, {pipeline_mode = #tpu.pipeline_mode<synchronous>, transform_indices = @transform_4, window_bounds = array<i64: 1, 4>}, {pipeline_mode = #tpu.pipeline_mode<synchronous>, transform_indices = @transform_5, window_bounds = array<i64: 1, 4>}, {pipeline_mode = #tpu.pipeline_mode<synchronous>, transform_indices = @transform_6, window_bounds = array<i64: 1, 4>}, {pipeline_mode = #tpu.pipeline_mode<synchronous>, transform_indices = @transform_7, window_bounds = array<i64: 4, 16>}, {pipeline_mode = #tpu.pipeline_mode<synchronous>, transform_indices = @transform_8, window_bounds = array<i64: 1, 16>}, {pipeline_mode = #tpu.pipeline_mode<synchronous>, transform_indices = @transform_9, window_bounds = array<i64: 1, 16>}, {pipeline_mode = #tpu.pipeline_mode<synchronous>, transform_indices = @transform_10, window_bounds = array<i64: 1, 16>}, {pipeline_mode = #tpu.pipeline_mode<synchronous>, transform_indices = @transform_11, window_bounds = array<i64: 20, 8>}, {pipeline_mode = #tpu.pipeline_mode<synchronous>, transform_indices = @transform_12, window_bounds = array<i64: 1, 8>}, {transform_indices = @transform_13, window_bounds = array<i64: 1, 16, 16>}]} {
    %cst = arith.constant 0.000000e+00 : f32
    %0 = vector.broadcast %cst : f32 to vector<8x4xf32>
    %c0 = arith.constant 0 : index
    %c0_0 = arith.constant 0 : index
    %c0_1 = arith.constant 0 : index
    %1 = vector.load %arg15[%c0, %c0_0, %c0_1] : memref<2x32x4xf32, #tpu.memory_space<vmem>>, vector<1x8x4xf32>
    %2 = vector.shape_cast %1 : vector<1x8x4xf32> to vector<8x4xf32>
    %3 = vector.shape_cast %0 : vector<8x4xf32> to vector<1x8x4xf32>
    tpu.vector_store %arg15[%c0, %c0_0, %c0_1], %3 {strides = array<i32>} : memref<2x32x4xf32, #tpu.memory_space<vmem>>, vector<1x8x4xf32>,
    %c0_2 = arith.constant 0 : index
    %c24 = arith.constant 24 : index
    %c0_3 = arith.constant 0 : index
    %4 = vector.load %arg15[%c0_2, %c24, %c0_3] : memref<2x32x4xf32, #tpu.memory_space<vmem>>, vector<1x8x4xf32>
    %5 = vector.shape_cast %4 : vector<1x8x4xf32> to vector<8x4xf32>
    %6 = vector.shape_cast %0 : vector<8x4xf32> to vector<1x8x4xf32>
    tpu.vector_store %arg15[%c0_2, %c24, %c0_3], %6 {strides = array<i32>} : memref<2x32x4xf32, #tpu.memory_space<vmem>>, vector<1x8x4xf32>,
    %c1 = arith.constant 1 : index
    %c0_4 = arith.constant 0 : index
    %c0_5 = arith.constant 0 : index
    %7 = vector.load %arg15[%c1, %c0_4, %c0_5] : memref<2x32x4xf32, #tpu.memory_space<vmem>>, vector<1x8x4xf32>
    %8 = vector.shape_cast %7 : vector<1x8x4xf32> to vector<8x4xf32>
    %9 = vector.shape_cast %0 : vector<8x4xf32> to vector<1x8x4xf32>
    tpu.vector_store %arg15[%c1, %c0_4, %c0_5], %9 {strides = array<i32>} : memref<2x32x4xf32, #tpu.memory_space<vmem>>, vector<1x8x4xf32>,
    %c1_6 = arith.constant 1 : index
    %c24_7 = arith.constant 24 : index
    %c0_8 = arith.constant 0 : index
    %10 = vector.load %arg15[%c1_6, %c24_7, %c0_8] : memref<2x32x4xf32, #tpu.memory_space<vmem>>, vector<1x8x4xf32>
    %11 = vector.shape_cast %10 : vector<1x8x4xf32> to vector<8x4xf32>
    %12 = vector.shape_cast %0 : vector<8x4xf32> to vector<1x8x4xf32>
    tpu.vector_store %arg15[%c1_6, %c24_7, %c0_8], %12 {strides = array<i32>} : memref<2x32x4xf32, #tpu.memory_space<vmem>>, vector<1x8x4xf32>,
    %c0_9 = arith.constant 0 : index
    %c0_10 = arith.constant 0 : index
    %c0_11 = arith.constant 0 : index
    %13 = vector.load %arg1[%c0_9, %c0_10, %c0_11] : memref<1x16x4xf32, #tpu.memory_space<vmem>>, vector<1x16x4xf32>
    %14 = vector.shape_cast %13 : vector<1x16x4xf32> to vector<16x4xf32>
    %c0_12 = arith.constant 0 : index
    %c0_13 = arith.constant 0 : index
    %15 = vector.load %arg2[%c0_12, %c0_13] : memref<4x8xf32, #tpu.memory_space<vmem>>, vector<4x8xf32>
    %cst_14 = arith.constant dense<0.000000e+00> : vector<16x8xf32>
    %16 = tpu.matmul %14, %15, %cst_14 {dimension_numbers = #tpu.dot_dimension_numbers<[1], [0], [0], [1], [0, 0, 1, 1], [], []>} : vector<16x4xf32>, vector<4x8xf32>, vector<16x8xf32> -> vector<16x8xf32>
    %c0_15 = arith.constant 0 : index
    %c0_16 = arith.constant 0 : index
    %17 = vector.load %arg3[%c0_15, %c0_16] : memref<1x8xf32, #tpu.memory_space<vmem>>, vector<1x8xf32>
    %18 = vector.broadcast %17 : vector<1x8xf32> to vector<16x8xf32>
    %19 = arith.addf %16, %18 : vector<16x8xf32>
    %20 = vector.extract_strided_slice %19 {offsets = [0, 0], sizes = [16, 4], strides = [1, 1]} : vector<16x8xf32> to vector<16x4xf32>
    %21 = vector.extract_strided_slice %19 {offsets = [0, 4], sizes = [16, 4], strides = [1, 1]} : vector<16x8xf32> to vector<16x4xf32>
    %c0_17 = arith.constant 0 : index
    %c8 = arith.constant 8 : index
    %c0_18 = arith.constant 0 : index
    %22 = vector.load %arg15[%c0_17, %c8, %c0_18] : memref<2x32x4xf32, #tpu.memory_space<vmem>>, vector<1x16x4xf32>
    %23 = vector.shape_cast %22 : vector<1x16x4xf32> to vector<16x4xf32>
    %24 = vector.shape_cast %20 : vector<16x4xf32> to vector<1x16x4xf32>
    tpu.vector_store %arg15[%c0_17, %c8, %c0_18], %24 {strides = array<i32>} : memref<2x32x4xf32, #tpu.memory_space<vmem>>, vector<1x16x4xf32>,
    %c1_19 = arith.constant 1 : index
    %c8_20 = arith.constant 8 : index
    %c0_21 = arith.constant 0 : index
    %25 = vector.load %arg15[%c1_19, %c8_20, %c0_21] : memref<2x32x4xf32, #tpu.memory_space<vmem>>, vector<1x16x4xf32>
    %26 = vector.shape_cast %25 : vector<1x16x4xf32> to vector<16x4xf32>
    %27 = vector.shape_cast %21 : vector<16x4xf32> to vector<1x16x4xf32>
    tpu.vector_store %arg15[%c1_19, %c8_20, %c0_21], %27 {strides = array<i32>} : memref<2x32x4xf32, #tpu.memory_space<vmem>>, vector<1x16x4xf32>,
    %28 = tpu.concatenate %20, %21 in 0 : vector<16x4xf32>, vector<16x4xf32> -> vector<32x4xf32>
    %c0_22 = arith.constant 0 : index
    %c0_23 = arith.constant 0 : index
    %29 = vector.load %arg4[%c0_22, %c0_23] : memref<7x4xf32, #tpu.memory_space<vmem>>, vector<7x4xf32>
    %c0_24 = arith.constant 0 : index
    %c0_25 = arith.constant 0 : index
    %30 = vector.load %arg5[%c0_24, %c0_25] : memref<1x4xf32, #tpu.memory_space<vmem>>, vector<1x4xf32>
    %c1_26 = arith.constant 1 : index
    %c6 = arith.constant 6 : index
    %c0_27 = arith.constant 0 : index
    %31 = vector.load %arg15[%c1_26, %c6, %c0_27] : memref<2x32x4xf32, #tpu.memory_space<vmem>>, vector<1x16x4xf32>
    %32 = vector.shape_cast %31 : vector<1x16x4xf32> to vector<16x4xf32>
    %c0_28 = arith.constant 0 : index
    %c7 = arith.constant 7 : index
    %c0_29 = arith.constant 0 : index
    %33 = vector.load %arg15[%c0_28, %c7, %c0_29] : memref<2x32x4xf32, #tpu.memory_space<vmem>>, vector<1x16x4xf32>
    %34 = vector.shape_cast %33 : vector<1x16x4xf32> to vector<16x4xf32>
    %c1_30 = arith.constant 1 : index
    %c7_31 = arith.constant 7 : index
    %c0_32 = arith.constant 0 : index
    %35 = vector.load %arg15[%c1_30, %c7_31, %c0_32] : memref<2x32x4xf32, #tpu.memory_space<vmem>>, vector<1x16x4xf32>
    %36 = vector.shape_cast %35 : vector<1x16x4xf32> to vector<16x4xf32>
    %c0_33 = arith.constant 0 : index
    %c8_34 = arith.constant 8 : index
    %c0_35 = arith.constant 0 : index
    %37 = vector.load %arg15[%c0_33, %c8_34, %c0_35] : memref<2x32x4xf32, #tpu.memory_space<vmem>>, vector<1x16x4xf32>
    %38 = vector.shape_cast %37 : vector<1x16x4xf32> to vector<16x4xf32>
    %c1_36 = arith.constant 1 : index
    %c8_37 = arith.constant 8 : index
    %c0_38 = arith.constant 0 : index
    %39 = vector.load %arg15[%c1_36, %c8_37, %c0_38] : memref<2x32x4xf32, #tpu.memory_space<vmem>>, vector<1x16x4xf32>
    %40 = vector.shape_cast %39 : vector<1x16x4xf32> to vector<16x4xf32>
    %c0_39 = arith.constant 0 : index
    %c9 = arith.constant 9 : index
    %c0_40 = arith.constant 0 : index
    %41 = vector.load %arg15[%c0_39, %c9, %c0_40] : memref<2x32x4xf32, #tpu.memory_space<vmem>>, vector<1x16x4xf32>
    %42 = vector.shape_cast %41 : vector<1x16x4xf32> to vector<16x4xf32>
    %c1_41 = arith.constant 1 : index
    %c9_42 = arith.constant 9 : index
    %c0_43 = arith.constant 0 : index
    %43 = vector.load %arg15[%c1_41, %c9_42, %c0_43] : memref<2x32x4xf32, #tpu.memory_space<vmem>>, vector<1x16x4xf32>
    %44 = vector.shape_cast %43 : vector<1x16x4xf32> to vector<16x4xf32>
    %c0_44 = arith.constant 0 : index
    %c10 = arith.constant 10 : index
    %c0_45 = arith.constant 0 : index
    %45 = vector.load %arg15[%c0_44, %c10, %c0_45] : memref<2x32x4xf32, #tpu.memory_space<vmem>>, vector<1x16x4xf32>
    %46 = vector.shape_cast %45 : vector<1x16x4xf32> to vector<16x4xf32>
    %47 = vector.extract_strided_slice %29 {offsets = [0, 0], sizes = [1, 4], strides = [1, 1]} : vector<7x4xf32> to vector<1x4xf32>
    %48 = vector.broadcast %47 : vector<1x4xf32> to vector<16x4xf32>
    %49 = arith.mulf %48, %32 : vector<16x4xf32>
    %50 = vector.broadcast %30 : vector<1x4xf32> to vector<16x4xf32>
    %51 = arith.addf %50, %49 : vector<16x4xf32>
    %52 = vector.extract_strided_slice %29 {offsets = [1, 0], sizes = [1, 4], strides = [1, 1]} : vector<7x4xf32> to vector<1x4xf32>
    %53 = vector.broadcast %52 : vector<1x4xf32> to vector<16x4xf32>
    %54 = arith.mulf %53, %34 : vector<16x4xf32>
    %55 = arith.addf %51, %54 : vector<16x4xf32>
    %56 = vector.extract_strided_slice %29 {offsets = [2, 0], sizes = [1, 4], strides = [1, 1]} : vector<7x4xf32> to vector<1x4xf32>
    %57 = vector.broadcast %56 : vector<1x4xf32> to vector<16x4xf32>
    %58 = arith.mulf %57, %36 : vector<16x4xf32>
    %59 = arith.addf %55, %58 : vector<16x4xf32>
    %60 = vector.extract_strided_slice %29 {offsets = [3, 0], sizes = [1, 4], strides = [1, 1]} : vector<7x4xf32> to vector<1x4xf32>
    %61 = vector.broadcast %60 : vector<1x4xf32> to vector<16x4xf32>
    %62 = arith.mulf %61, %38 : vector<16x4xf32>
    %63 = arith.addf %59, %62 : vector<16x4xf32>
    %64 = vector.extract_strided_slice %29 {offsets = [4, 0], sizes = [1, 4], strides = [1, 1]} : vector<7x4xf32> to vector<1x4xf32>
    %65 = vector.broadcast %64 : vector<1x4xf32> to vector<16x4xf32>
    %66 = arith.mulf %65, %40 : vector<16x4xf32>
    %67 = arith.addf %63, %66 : vector<16x4xf32>
    %68 = vector.extract_strided_slice %29 {offsets = [5, 0], sizes = [1, 4], strides = [1, 1]} : vector<7x4xf32> to vector<1x4xf32>
    %69 = vector.broadcast %68 : vector<1x4xf32> to vector<16x4xf32>
    %70 = arith.mulf %69, %42 : vector<16x4xf32>
    %71 = arith.addf %67, %70 : vector<16x4xf32>
    %72 = vector.extract_strided_slice %29 {offsets = [6, 0], sizes = [1, 4], strides = [1, 1]} : vector<7x4xf32> to vector<1x4xf32>
    %73 = vector.broadcast %72 : vector<1x4xf32> to vector<16x4xf32>
    %74 = arith.mulf %73, %44 : vector<16x4xf32>
    %75 = arith.addf %71, %74 : vector<16x4xf32>
    %76 = vector.extract_strided_slice %29 {offsets = [0, 0], sizes = [1, 4], strides = [1, 1]} : vector<7x4xf32> to vector<1x4xf32>
    %77 = vector.broadcast %76 : vector<1x4xf32> to vector<16x4xf32>
    %78 = arith.mulf %77, %34 : vector<16x4xf32>
    %79 = vector.broadcast %30 : vector<1x4xf32> to vector<16x4xf32>
    %80 = arith.addf %79, %78 : vector<16x4xf32>
    %81 = vector.extract_strided_slice %29 {offsets = [1, 0], sizes = [1, 4], strides = [1, 1]} : vector<7x4xf32> to vector<1x4xf32>
    %82 = vector.broadcast %81 : vector<1x4xf32> to vector<16x4xf32>
    %83 = arith.mulf %82, %36 : vector<16x4xf32>
    %84 = arith.addf %80, %83 : vector<16x4xf32>
    %85 = vector.extract_strided_slice %29 {offsets = [2, 0], sizes = [1, 4], strides = [1, 1]} : vector<7x4xf32> to vector<1x4xf32>
    %86 = vector.broadcast %85 : vector<1x4xf32> to vector<16x4xf32>
    %87 = arith.mulf %86, %38 : vector<16x4xf32>
    %88 = arith.addf %84, %87 : vector<16x4xf32>
    %89 = vector.extract_strided_slice %29 {offsets = [3, 0], sizes = [1, 4], strides = [1, 1]} : vector<7x4xf32> to vector<1x4xf32>
    %90 = vector.broadcast %89 : vector<1x4xf32> to vector<16x4xf32>
    %91 = arith.mulf %90, %40 : vector<16x4xf32>
    %92 = arith.addf %88, %91 : vector<16x4xf32>
    %93 = vector.extract_strided_slice %29 {offsets = [4, 0], sizes = [1, 4], strides = [1, 1]} : vector<7x4xf32> to vector<1x4xf32>
    %94 = vector.broadcast %93 : vector<1x4xf32> to vector<16x4xf32>
    %95 = arith.mulf %94, %42 : vector<16x4xf32>
    %96 = arith.addf %92, %95 : vector<16x4xf32>
    %97 = vector.extract_strided_slice %29 {offsets = [5, 0], sizes = [1, 4], strides = [1, 1]} : vector<7x4xf32> to vector<1x4xf32>
    %98 = vector.broadcast %97 : vector<1x4xf32> to vector<16x4xf32>
    %99 = arith.mulf %98, %44 : vector<16x4xf32>
    %100 = arith.addf %96, %99 : vector<16x4xf32>
    %101 = vector.extract_strided_slice %29 {offsets = [6, 0], sizes = [1, 4], strides = [1, 1]} : vector<7x4xf32> to vector<1x4xf32>
    %102 = vector.broadcast %101 : vector<1x4xf32> to vector<16x4xf32>
    %103 = arith.mulf %102, %46 : vector<16x4xf32>
    %104 = arith.addf %100, %103 : vector<16x4xf32>
    %105 = tpu.concatenate %75, %104 in 0 : vector<16x4xf32>, vector<16x4xf32> -> vector<32x4xf32>
    %cst_46 = arith.constant dense<0.000000e+00> : vector<32xf32>
    %106 = vector.multi_reduction <add>, %105, %cst_46 [1] : vector<32x4xf32> to vector<32xf32>
    %107 = vector.shape_cast %106 : vector<32xf32> to vector<32x1xf32>
    %cst_47 = arith.constant 4.000000e+00 : f32
    %108 = vector.broadcast %cst_47 : f32 to vector<32x1xf32>
    %109 = arith.divf %107, %108 : vector<32x1xf32>
    %110 = vector.broadcast %109 : vector<32x1xf32> to vector<32x4xf32>
    %111 = arith.subf %105, %110 : vector<32x4xf32>
    %112 = arith.mulf %111, %111 : vector<32x4xf32>
    %cst_48 = arith.constant dense<0.000000e+00> : vector<32xf32>
    %113 = vector.multi_reduction <add>, %112, %cst_48 [1] : vector<32x4xf32> to vector<32xf32>
    %114 = vector.shape_cast %113 : vector<32xf32> to vector<32x1xf32>
    %cst_49 = arith.constant 4.000000e+00 : f32
    %115 = vector.broadcast %cst_49 : f32 to vector<32x1xf32>
    %116 = arith.divf %114, %115 : vector<32x1xf32>
    %117 = vector.broadcast %109 : vector<32x1xf32> to vector<32x4xf32>
    %118 = arith.subf %105, %117 : vector<32x4xf32>
    %cst_50 = arith.constant 9.99999997E-7 : f32
    %119 = vector.broadcast %cst_50 : f32 to vector<32x1xf32>
    %120 = arith.addf %116, %119 : vector<32x1xf32>
    %121 = math.rsqrt %120 : vector<32x1xf32>
    %122 = vector.broadcast %121 : vector<32x1xf32> to vector<32x4xf32>
    %123 = arith.mulf %118, %122 : vector<32x4xf32>
    %c0_51 = arith.constant 0 : index
    %c0_52 = arith.constant 0 : index
    %124 = vector.load %arg6[%c0_51, %c0_52] : memref<1x4xf32, #tpu.memory_space<vmem>>, vector<1x4xf32>
    %125 = vector.broadcast %124 : vector<1x4xf32> to vector<32x4xf32>
    %126 = arith.mulf %123, %125 : vector<32x4xf32>
    %c0_53 = arith.constant 0 : index
    %c0_54 = arith.constant 0 : index
    %127 = vector.load %arg7[%c0_53, %c0_54] : memref<1x4xf32, #tpu.memory_space<vmem>>, vector<1x4xf32>
    %128 = vector.broadcast %127 : vector<1x4xf32> to vector<32x4xf32>
    %129 = arith.addf %126, %128 : vector<32x4xf32>
    %c0_55 = arith.constant 0 : index
    %c0_56 = arith.constant 0 : index
    %130 = vector.load %arg8[%c0_55, %c0_56] : memref<4x16xf32, #tpu.memory_space<vmem>>, vector<4x16xf32>
    %cst_57 = arith.constant dense<0.000000e+00> : vector<32x16xf32>
    %131 = tpu.matmul %129, %130, %cst_57 {dimension_numbers = #tpu.dot_dimension_numbers<[1], [0], [0], [1], [0, 0, 1, 1], [], []>} : vector<32x4xf32>, vector<4x16xf32>, vector<32x16xf32> -> vector<32x16xf32>
    %c0_58 = arith.constant 0 : index
    %c0_59 = arith.constant 0 : index
    %132 = vector.load %arg9[%c0_58, %c0_59] : memref<1x16xf32, #tpu.memory_space<vmem>>, vector<1x16xf32>
    %133 = vector.broadcast %132 : vector<1x16xf32> to vector<32x16xf32>
    %134 = arith.addf %131, %133 : vector<32x16xf32>
    %135 = arith.mulf %134, %134 : vector<32x16xf32>
    %136 = arith.mulf %134, %135 : vector<32x16xf32>
    %cst_60 = arith.constant 4.471500e-02 : f32
    %137 = vector.broadcast %cst_60 : f32 to vector<32x16xf32>
    %138 = arith.mulf %137, %136 : vector<32x16xf32>
    %139 = arith.addf %134, %138 : vector<32x16xf32>
    %cst_61 = arith.constant 0.797884583 : f32
    %140 = vector.broadcast %cst_61 : f32 to vector<32x16xf32>
    %141 = arith.mulf %140, %139 : vector<32x16xf32>
    %142 = math.tanh %141 : vector<32x16xf32>
    %cst_62 = arith.constant 1.000000e+00 : f32
    %143 = vector.broadcast %cst_62 : f32 to vector<32x16xf32>
    %144 = arith.addf %143, %142 : vector<32x16xf32>
    %cst_63 = arith.constant 5.000000e-01 : f32
    %145 = vector.broadcast %cst_63 : f32 to vector<32x16xf32>
    %146 = arith.mulf %145, %144 : vector<32x16xf32>
    %147 = arith.mulf %134, %146 : vector<32x16xf32>
    %148 = arith.mulf %147, %147 : vector<32x16xf32>
    %cst_64 = arith.constant dense<0.000000e+00> : vector<16xf32>
    %149 = vector.multi_reduction <add>, %148, %cst_64 [0] : vector<32x16xf32> to vector<16xf32>
    %150 = vector.shape_cast %149 : vector<16xf32> to vector<1x16xf32>
    %151 = math.sqrt %150 : vector<1x16xf32>
    %cst_65 = arith.constant dense<0.000000e+00> : vector<1xf32>
    %152 = vector.multi_reduction <add>, %151, %cst_65 [1] : vector<1x16xf32> to vector<1xf32>
    %153 = vector.shape_cast %152 : vector<1xf32> to vector<1x1xf32>
    %cst_66 = arith.constant 1.600000e+01 : f32
    %154 = vector.broadcast %cst_66 : f32 to vector<1x1xf32>
    %155 = arith.divf %153, %154 : vector<1x1xf32>
    %cst_67 = arith.constant 9.99999997E-7 : f32
    %156 = vector.broadcast %cst_67 : f32 to vector<1x1xf32>
    %157 = arith.addf %155, %156 : vector<1x1xf32>
    %158 = vector.broadcast %157 : vector<1x1xf32> to vector<1x16xf32>
    %159 = arith.divf %151, %158 : vector<1x16xf32>
    %c0_68 = arith.constant 0 : index
    %c0_69 = arith.constant 0 : index
    %160 = vector.load %arg10[%c0_68, %c0_69] : memref<1x16xf32, #tpu.memory_space<vmem>>, vector<1x16xf32>
    %161 = vector.broadcast %159 : vector<1x16xf32> to vector<32x16xf32>
    %162 = arith.mulf %147, %161 : vector<32x16xf32>
    %163 = vector.broadcast %160 : vector<1x16xf32> to vector<32x16xf32>
    %164 = arith.mulf %163, %162 : vector<32x16xf32>
    %c0_70 = arith.constant 0 : index
    %c0_71 = arith.constant 0 : index
    %165 = vector.load %arg11[%c0_70, %c0_71] : memref<1x16xf32, #tpu.memory_space<vmem>>, vector<1x16xf32>
    %166 = vector.broadcast %165 : vector<1x16xf32> to vector<32x16xf32>
    %167 = arith.addf %164, %166 : vector<32x16xf32>
    %168 = arith.addf %167, %147 : vector<32x16xf32>
    %169 = tpu.concatenate %168, %28 in 1 : vector<32x16xf32>, vector<32x4xf32> -> vector<32x20xf32>
    %c0_72 = arith.constant 0 : index
    %c0_73 = arith.constant 0 : index
    %170 = vector.load %arg12[%c0_72, %c0_73] : memref<20x8xf32, #tpu.memory_space<vmem>>, vector<20x8xf32>
    %cst_74 = arith.constant dense<0.000000e+00> : vector<32x8xf32>
    %171 = tpu.matmul %169, %170, %cst_74 {dimension_numbers = #tpu.dot_dimension_numbers<[1], [0], [0], [1], [0, 0, 1, 1], [], []>} : vector<32x20xf32>, vector<20x8xf32>, vector<32x8xf32> -> vector<32x8xf32>
    %c0_75 = arith.constant 0 : index
    %c0_76 = arith.constant 0 : index
    %172 = vector.load %arg13[%c0_75, %c0_76] : memref<1x8xf32, #tpu.memory_space<vmem>>, vector<1x8xf32>
    %173 = vector.broadcast %172 : vector<1x8xf32> to vector<32x8xf32>
    %174 = arith.addf %171, %173 : vector<32x8xf32>
    %175 = vector.extract_strided_slice %174 {offsets = [0, 0], sizes = [16, 8], strides = [1, 1]} : vector<32x8xf32> to vector<16x8xf32>
    %176 = vector.extract_strided_slice %174 {offsets = [16, 0], sizes = [16, 8], strides = [1, 1]} : vector<32x8xf32> to vector<16x8xf32>
    %177 = tpu.concatenate %175, %176 in 1 : vector<16x8xf32>, vector<16x8xf32> -> vector<16x16xf32>
    %c0_77 = arith.constant 0 : index
    %c0_78 = arith.constant 0 : index
    %c0_79 = arith.constant 0 : index
    %178 = vector.load %arg14[%c0_77, %c0_78, %c0_79] : memref<1x16x16xf32, #tpu.memory_space<vmem>>, vector<1x16x16xf32>
    %179 = vector.shape_cast %178 : vector<1x16x16xf32> to vector<16x16xf32>
    %180 = vector.shape_cast %177 : vector<16x16xf32> to vector<1x16x16xf32>
    tpu.vector_store %arg14[%c0_77, %c0_78, %c0_79], %180 {strides = array<i32>} : memref<1x16x16xf32, #tpu.memory_space<vmem>>, vector<1x16x16xf32>,
    return
  }
  func.func @transform_0(%arg0: i32) -> (i32, i32, i32) {
    %c0_i32 = arith.constant 0 : i32
    %c0_i32_0 = arith.constant 0 : i32
    %c0_i32_1 = arith.constant 0 : i32
    return %arg0, %c0_i32, %c0_i32_0 : i32, i32, i32
  }
  func.func @transform_1(%arg0: i32) -> (i32, i32) {
    %c0_i32 = arith.constant 0 : i32
    %c0_i32_0 = arith.constant 0 : i32
    %c0_i32_1 = arith.constant 0 : i32
    return %c0_i32, %c0_i32_0 : i32, i32
  }
  func.func @transform_2(%arg0: i32) -> (i32, i32) {
    %c0_i32 = arith.constant 0 : i32
    %c0_i32_0 = arith.constant 0 : i32
    %c0_i32_1 = arith.constant 0 : i32
    return %c0_i32, %c0_i32_0 : i32, i32
  }
  func.func @transform_3(%arg0: i32) -> (i32, i32) {
    %c0_i32 = arith.constant 0 : i32
    %c0_i32_0 = arith.constant 0 : i32
    %c0_i32_1 = arith.constant 0 : i32
    return %c0_i32, %c0_i32_0 : i32, i32
  }
  func.func @transform_4(%arg0: i32) -> (i32, i32) {
    %c0_i32 = arith.constant 0 : i32
    %c0_i32_0 = arith.constant 0 : i32
    %c0_i32_1 = arith.constant 0 : i32
    return %c0_i32, %c0_i32_0 : i32, i32
  }
  func.func @transform_5(%arg0: i32) -> (i32, i32) {
    %c0_i32 = arith.constant 0 : i32
    %c0_i32_0 = arith.constant 0 : i32
    %c0_i32_1 = arith.constant 0 : i32
    return %c0_i32, %c0_i32_0 : i32, i32
  }
  func.func @transform_6(%arg0: i32) -> (i32, i32) {
    %c0_i32 = arith.constant 0 : i32
    %c0_i32_0 = arith.constant 0 : i32
    %c0_i32_1 = arith.constant 0 : i32
    return %c0_i32, %c0_i32_0 : i32, i32
  }
  func.func @transform_7(%arg0: i32) -> (i32, i32) {
    %c0_i32 = arith.constant 0 : i32
    %c0_i32_0 = arith.constant 0 : i32
    %c0_i32_1 = arith.constant 0 : i32
    return %c0_i32, %c0_i32_0 : i32, i32
  }
  func.func @transform_8(%arg0: i32) -> (i32, i32) {
    %c0_i32 = arith.constant 0 : i32
    %c0_i32_0 = arith.constant 0 : i32
    %c0_i32_1 = arith.constant 0 : i32
    return %c0_i32, %c0_i32_0 : i32, i32
  }
  func.func @transform_9(%arg0: i32) -> (i32, i32) {
    %c0_i32 = arith.constant 0 : i32
    %c0_i32_0 = arith.constant 0 : i32
    %c0_i32_1 = arith.constant 0 : i32
    return %c0_i32, %c0_i32_0 : i32, i32
  }
  func.func @transform_10(%arg0: i32) -> (i32, i32) {
    %c0_i32 = arith.constant 0 : i32
    %c0_i32_0 = arith.constant 0 : i32
    %c0_i32_1 = arith.constant 0 : i32
    return %c0_i32, %c0_i32_0 : i32, i32
  }
  func.func @transform_11(%arg0: i32) -> (i32, i32) {
    %c0_i32 = arith.constant 0 : i32
    %c0_i32_0 = arith.constant 0 : i32
    %c0_i32_1 = arith.constant 0 : i32
    return %c0_i32, %c0_i32_0 : i32, i32
  }
  func.func @transform_12(%arg0: i32) -> (i32, i32) {
    %c0_i32 = arith.constant 0 : i32
    %c0_i32_0 = arith.constant 0 : i32
    %c0_i32_1 = arith.constant 0 : i32
    return %c0_i32, %c0_i32_0 : i32, i32
  }
  func.func @transform_13(%arg0: i32) -> (i32, i32, i32) {
    %c0_i32 = arith.constant 0 : i32
    %c0_i32_0 = arith.constant 0 : i32
    %c0_i32_1 = arith.constant 0 : i32
    return %arg0, %c0_i32, %c0_i32_0 : i32, i32, i32
  }
}

</mosaic_0001>

<llo_original>
// kernel: tpu_custom_call.1
$region0: #{tpu_custom_call.1}
  #allocation0 [shape = 'u32[]', space=smem, size = 0x4, offset = 0x4, fixed_abs, tag = 'smem constant byte address 0x4 - core index']
  #allocation1 [shape = 'u32[144,128]{1,0:T(1,128)}', space=vmem, size = 0x12000, scoped, tag = 'internal scratch']
  #allocation2 [shape = 'f32[2,32,4]{2,1,0:T(8,128)}', space=vmem, size = 0x8000, scoped, tag = 'scratch operand']
  %s0 = inlined_call_operand.vmem [shape: f32[2,16,4], index: 0, kind: input, shape index: {}]
  %s1 = inlined_call_operand.vmem [shape: f32[4,8], index: 1, kind: input, shape index: {}]
  %s2 = inlined_call_operand.vmem [shape: f32[1,8], index: 2, kind: input, shape index: {}]
  %s3 = inlined_call_operand.vmem [shape: f32[7,4], index: 3, kind: input, shape index: {}]
  %s4 = inlined_call_operand.vmem [shape: f32[1,4], index: 4, kind: input, shape index: {}]
  %s5 = inlined_call_operand.vmem [shape: f32[1,4], index: 5, kind: input, shape index: {}]
  %s6 = inlined_call_operand.vmem [shape: f32[1,4], index: 6, kind: input, shape index: {}]
  %s7 = inlined_call_operand.vmem [shape: f32[4,16], index: 7, kind: input, shape index: {}]
  %s8 = inlined_call_operand.vmem [shape: f32[1,16], index: 8, kind: input, shape index: {}]
  %s9 = inlined_call_operand.vmem [shape: f32[1,16], index: 9, kind: input, shape index: {}]
  %s10 = inlined_call_operand.vmem [shape: f32[1,16], index: 10, kind: input, shape index: {}]
  %s11 = inlined_call_operand.vmem [shape: f32[20,8], index: 11, kind: input, shape index: {}]
  %s12 = inlined_call_operand.vmem [shape: f32[1,8], index: 12, kind: input, shape index: {}]
  %s13 = inlined_call_operand.hbm [shape: f32[2,16,16], index: 13, kind: output, shape index: {}]
  %s14 = sld [smem:[#allocation0]]
  $region85: #{tpu_custom_call.1} parent=0
    _
  %s16 = ssub.s32 1, %s14
  %s17 = scalar_select 0, %s16, %s14
  $region1: #{tpu_custom_call.1} parent=0
    #allocation3 [shape = 'u8[16384]{0}', space=vmem, size = 0x4000, scoped, tag = 'output window, operand 0']
    #allocation4 [shape = 's32[2]{0}', space=sflag, size = 0x8, scoped, tag = 'scoped memory for tpu_custom_call.1']
    %18 = vsyncpa [#allocation4], 0
    %s19 = scalar_lea.sflag [#allocation4], 1
    %20 = vsyncpa %s19, 0
    loop: start=0, step=1, limit=4
    $region2: #{tpu_custom_call.1} parent=1 // loop_pre_header
      _
    $region3: #{tpu_custom_call.1} parent=1 // loop_header
      %s22 = sphi 0, %s26
      %p23 = scmp.ge.s32.totalorder %s22, 4
      %s32 = sphi 0, %s34
      %s35 = sphi 0, %s32
      %s36 = sphi 0, %s35
      %s52 = sphi 0, %s36
      %s56 = sphi 0, %s56
      %s58 = sphi 0, %s56
      %s59 = sphi 0, %s58
      %s73 = sphi 0, %s59
      %s77 = sphi 0, %s77
      %s79 = sphi 0, %s77
      %s80 = sphi 0, %s79
      %s94 = sphi 0, %s80
      %s98 = sphi 0, %s98
      %s100 = sphi 0, %s98
      %s101 = sphi 0, %s100
      %s115 = sphi 0, %s101
      %s119 = sphi 0, %s119
      %s121 = sphi 0, %s119
      %s122 = sphi 0, %s121
      %s136 = sphi 0, %s122
      %s140 = sphi 0, %s140
      %s142 = sphi 0, %s140
      %s143 = sphi 0, %s142
      %s157 = sphi 0, %s143
      %s161 = sphi 0, %s161
      %s163 = sphi 0, %s161
      %s164 = sphi 0, %s163
      %s178 = sphi 0, %s164
      %s182 = sphi 0, %s182
      %s184 = sphi 0, %s182
      %s185 = sphi 0, %s184
      %s199 = sphi 0, %s185
      %s203 = sphi 0, %s203
      %s205 = sphi 0, %s203
      %s206 = sphi 0, %s205
      %s220 = sphi 0, %s206
      %s224 = sphi 0, %s224
      %s226 = sphi 0, %s224
      %s227 = sphi 0, %s226
      %s241 = sphi 0, %s227
      %s245 = sphi 0, %s245
      %s247 = sphi 0, %s245
      %s248 = sphi 0, %s247
      %s262 = sphi 0, %s248
      %s266 = sphi 0, %s266
      %s268 = sphi 0, %s266
      %s269 = sphi 0, %s268
      %s283 = sphi 0, %s269
      %s287 = sphi 0, %s287
      %s289 = sphi 0, %s287
      %s290 = sphi 0, %s289
      %s304 = sphi 0, %s290
      %s310 = sphi 0, %s312
      %s313 = sphi 0, %s310
      %s314 = sphi 0, %s313
      %s330 = sphi 0, %s314
    $region4: #{tpu_custom_call.1} parent=1 // loop_header_branch
      %25 = sbr.rel (%p23) target = $region8
    $region5: #{tpu_custom_call.1} parent=1 // loop_body
      %s27 = ssub.s32 %s22, 1
      %s28 = ssub.s32 %s22, 2
      %s29 = sadd.s32 %s22, 1
      %s30 = ssub.s32 %s22, %s29
      %p31 = scmp.eq.s32.totalorder %s30, 0
      %s33 = sadd.s32 %s32, 1
      %s34 = scalar_select %p31, %s32, %s33
      %p37 = pneg %p31
      %p38 = scmp.eq.s32.totalorder %s22, 1
      %p39 = por %p37, %p38
      %p40 = scmp.ne.s32.totalorder %s32, %s35
      %p41 = scmp.eq.s32.totalorder %s22, 0
      %p42 = por %p40, %p41
      %p43 = scmp.ne.s32.totalorder %s32, %s35
      %p44 = scmp.eq.s32.totalorder %s27, 1
      %p45 = por %p43, %p44
      %p46 = scmp.ne.s32.totalorder %s35, %s36
      %p47 = scmp.eq.s32.totalorder %s27, 0
      %p48 = por %p46, %p47
      %p49 = scmp.ne.s32.totalorder %s35, %s36
      %p50 = scmp.eq.s32.totalorder %s28, 1
      %p51 = por %p49, %p50
      %p53 = scmp.ne.s32.totalorder %s36, %s52
      %p54 = scmp.eq.s32.totalorder %s28, 0
      %p55 = por %p53, %p54
      %s57 = sadd.s32 %s56, 1
      %p60 = scmp.eq.s32.totalorder %s22, 1
      %p61 = scmp.ne.s32.totalorder %s56, %s58
      %p62 = scmp.eq.s32.totalorder %s22, 0
      %p63 = por %p61, %p62
      %p64 = scmp.ne.s32.totalorder %s56, %s58
      %p65 = scmp.eq.s32.totalorder %s27, 1
      %p66 = por %p64, %p65
      %p67 = scmp.ne.s32.totalorder %s58, %s59
      %p68 = scmp.eq.s32.totalorder %s27, 0
      %p69 = por %p67, %p68
      %p70 = scmp.ne.s32.totalorder %s58, %s59
      %p71 = scmp.eq.s32.totalorder %s28, 1
      %p72 = por %p70, %p71
      %p74 = scmp.ne.s32.totalorder %s59, %s73
      %p75 = scmp.eq.s32.totalorder %s28, 0
      %p76 = por %p74, %p75
      %s78 = sadd.s32 %s77, 1
      %p81 = scmp.eq.s32.totalorder %s22, 1
      %p82 = scmp.ne.s32.totalorder %s77, %s79
      %p83 = scmp.eq.s32.totalorder %s22, 0
      %p84 = por %p82, %p83
      %p85 = scmp.ne.s32.totalorder %s77, %s79
      %p86 = scmp.eq.s32.totalorder %s27, 1
      %p87 = por %p85, %p86
      %p88 = scmp.ne.s32.totalorder %s79, %s80
      %p89 = scmp.eq.s32.totalorder %s27, 0
      %p90 = por %p88, %p89
      %p91 = scmp.ne.s32.totalorder %s79, %s80
      %p92 = scmp.eq.s32.totalorder %s28, 1
      %p93 = por %p91, %p92
      %p95 = scmp.ne.s32.totalorder %s80, %s94
      %p96 = scmp.eq.s32.totalorder %s28, 0
      %p97 = por %p95, %p96
      %s99 = sadd.s32 %s98, 1
      %p102 = scmp.eq.s32.totalorder %s22, 1
      %p103 = scmp.ne.s32.totalorder %s98, %s100
      %p104 = scmp.eq.s32.totalorder %s22, 0
      %p105 = por %p103, %p104
      %p106 = scmp.ne.s32.totalorder %s98, %s100
      %p107 = scmp.eq.s32.totalorder %s27, 1
      %p108 = por %p106, %p107
      %p109 = scmp.ne.s32.totalorder %s100, %s101
      %p110 = scmp.eq.s32.totalorder %s27, 0
      %p111 = por %p109, %p110
      %p112 = scmp.ne.s32.totalorder %s100, %s101
      %p113 = scmp.eq.s32.totalorder %s28, 1
      %p114 = por %p112, %p113
      %p116 = scmp.ne.s32.totalorder %s101, %s115
      %p117 = scmp.eq.s32.totalorder %s28, 0
      %p118 = por %p116, %p117
      %s120 = sadd.s32 %s119, 1
      %p123 = scmp.eq.s32.totalorder %s22, 1
      %p124 = scmp.ne.s32.totalorder %s119, %s121
      %p125 = scmp.eq.s32.totalorder %s22, 0
      %p126 = por %p124, %p125
      %p127 = scmp.ne.s32.totalorder %s119, %s121
      %p128 = scmp.eq.s32.totalorder %s27, 1
      %p129 = por %p127, %p128
      %p130 = scmp.ne.s32.totalorder %s121, %s122
      %p131 = scmp.eq.s32.totalorder %s27, 0
      %p132 = por %p130, %p131
      %p133 = scmp.ne.s32.totalorder %s121, %s122
      %p134 = scmp.eq.s32.totalorder %s28, 1
      %p135 = por %p133, %p134
      %p137 = scmp.ne.s32.totalorder %s122, %s136
      %p138 = scmp.eq.s32.totalorder %s28, 0
      %p139 = por %p137, %p138
      %s141 = sadd.s32 %s140, 1
      %p144 = scmp.eq.s32.totalorder %s22, 1
      %p145 = scmp.ne.s32.totalorder %s140, %s142
      %p146 = scmp.eq.s32.totalorder %s22, 0
      %p147 = por %p145, %p146
      %p148 = scmp.ne.s32.totalorder %s140, %s142
      %p149 = scmp.eq.s32.totalorder %s27, 1
      %p150 = por %p148, %p149
      %p151 = scmp.ne.s32.totalorder %s142, %s143
      %p152 = scmp.eq.s32.totalorder %s27, 0
      %p153 = por %p151, %p152
      %p154 = scmp.ne.s32.totalorder %s142, %s143
      %p155 = scmp.eq.s32.totalorder %s28, 1
      %p156 = por %p154, %p155
      %p158 = scmp.ne.s32.totalorder %s143, %s157
      %p159 = scmp.eq.s32.totalorder %s28, 0
      %p160 = por %p158, %p159
      %s162 = sadd.s32 %s161, 1
      %p165 = scmp.eq.s32.totalorder %s22, 1
      %p166 = scmp.ne.s32.totalorder %s161, %s163
      %p167 = scmp.eq.s32.totalorder %s22, 0
      %p168 = por %p166, %p167
      %p169 = scmp.ne.s32.totalorder %s161, %s163
      %p170 = scmp.eq.s32.totalorder %s27, 1
      %p171 = por %p169, %p170
      %p172 = scmp.ne.s32.totalorder %s163, %s164
      %p173 = scmp.eq.s32.totalorder %s27, 0
      %p174 = por %p172, %p173
      %p175 = scmp.ne.s32.totalorder %s163, %s164
      %p176 = scmp.eq.s32.totalorder %s28, 1
      %p177 = por %p175, %p176
      %p179 = scmp.ne.s32.totalorder %s164, %s178
      %p180 = scmp.eq.s32.totalorder %s28, 0
      %p181 = por %p179, %p180
      %s183 = sadd.s32 %s182, 1
      %p186 = scmp.eq.s32.totalorder %s22, 1
      %p187 = scmp.ne.s32.totalorder %s182, %s184
      %p188 = scmp.eq.s32.totalorder %s22, 0
      %p189 = por %p187, %p188
      %p190 = scmp.ne.s32.totalorder %s182, %s184
      %p191 = scmp.eq.s32.totalorder %s27, 1
      %p192 = por %p190, %p191
      %p193 = scmp.ne.s32.totalorder %s184, %s185
      %p194 = scmp.eq.s32.totalorder %s27, 0
      %p195 = por %p193, %p194
      %p196 = scmp.ne.s32.totalorder %s184, %s185
      %p197 = scmp.eq.s32.totalorder %s28, 1
      %p198 = por %p196, %p197
      %p200 = scmp.ne.s32.totalorder %s185, %s199
      %p201 = scmp.eq.s32.totalorder %s28, 0
      %p202 = por %p200, %p201
      %s204 = sadd.s32 %s203, 1
      %p207 = scmp.eq.s32.totalorder %s22, 1
      %p208 = scmp.ne.s32.totalorder %s203, %s205
      %p209 = scmp.eq.s32.totalorder %s22, 0
      %p210 = por %p208, %p209
      %p211 = scmp.ne.s32.totalorder %s203, %s205
      %p212 = scmp.eq.s32.totalorder %s27, 1
      %p213 = por %p211, %p212
      %p214 = scmp.ne.s32.totalorder %s205, %s206
      %p215 = scmp.eq.s32.totalorder %s27, 0
      %p216 = por %p214, %p215
      %p217 = scmp.ne.s32.totalorder %s205, %s206
      %p218 = scmp.eq.s32.totalorder %s28, 1
      %p219 = por %p217, %p218
      %p221 = scmp.ne.s32.totalorder %s206, %s220
      %p222 = scmp.eq.s32.totalorder %s28, 0
      %p223 = por %p221, %p222
      %s225 = sadd.s32 %s224, 1
      %p228 = scmp.eq.s32.totalorder %s22, 1
      %p229 = scmp.ne.s32.totalorder %s224, %s226
      %p230 = scmp.eq.s32.totalorder %s22, 0
      %p231 = por %p229, %p230
      %p232 = scmp.ne.s32.totalorder %s224, %s226
      %p233 = scmp.eq.s32.totalorder %s27, 1
      %p234 = por %p232, %p233
      %p235 = scmp.ne.s32.totalorder %s226, %s227
      %p236 = scmp.eq.s32.totalorder %s27, 0
      %p237 = por %p235, %p236
      %p238 = scmp.ne.s32.totalorder %s226, %s227
      %p239 = scmp.eq.s32.totalorder %s28, 1
      %p240 = por %p238, %p239
      %p242 = scmp.ne.s32.totalorder %s227, %s241
      %p243 = scmp.eq.s32.totalorder %s28, 0
      %p244 = por %p242, %p243
      %s246 = sadd.s32 %s245, 1
      %p249 = scmp.eq.s32.totalorder %s22, 1
      %p250 = scmp.ne.s32.totalorder %s245, %s247
      %p251 = scmp.eq.s32.totalorder %s22, 0
      %p252 = por %p250, %p251
      %p253 = scmp.ne.s32.totalorder %s245, %s247
      %p254 = scmp.eq.s32.totalorder %s27, 1
      %p255 = por %p253, %p254
      %p256 = scmp.ne.s32.totalorder %s247, %s248
      %p257 = scmp.eq.s32.totalorder %s27, 0
      %p258 = por %p256, %p257
      %p259 = scmp.ne.s32.totalorder %s247, %s248
      %p260 = scmp.eq.s32.totalorder %s28, 1
      %p261 = por %p259, %p260
      %p263 = scmp.ne.s32.totalorder %s248, %s262
      %p264 = scmp.eq.s32.totalorder %s28, 0
      %p265 = por %p263, %p264
      %s267 = sadd.s32 %s266, 1
      %p270 = scmp.eq.s32.totalorder %s22, 1
      %p271 = scmp.ne.s32.totalorder %s266, %s268
      %p272 = scmp.eq.s32.totalorder %s22, 0
      %p273 = por %p271, %p272
      %p274 = scmp.ne.s32.totalorder %s266, %s268
      %p275 = scmp.eq.s32.totalorder %s27, 1
      %p276 = por %p274, %p275
      %p277 = scmp.ne.s32.totalorder %s268, %s269
      %p278 = scmp.eq.s32.totalorder %s27, 0
      %p279 = por %p277, %p278
      %p280 = scmp.ne.s32.totalorder %s268, %s269
      %p281 = scmp.eq.s32.totalorder %s28, 1
      %p282 = por %p280, %p281
      %p284 = scmp.ne.s32.totalorder %s269, %s283
      %p285 = scmp.eq.s32.totalorder %s28, 0
      %p286 = por %p284, %p285
      %s288 = sadd.s32 %s287, 1
      %p291 = scmp.eq.s32.totalorder %s22, 1
      %p292 = scmp.ne.s32.totalorder %s287, %s289
      %p293 = scmp.eq.s32.totalorder %s22, 0
      %p294 = por %p292, %p293
      %p295 = scmp.ne.s32.totalorder %s287, %s289
      %p296 = scmp.eq.s32.totalorder %s27, 1
      %p297 = por %p295, %p296
      %p298 = scmp.ne.s32.totalorder %s289, %s290
      %p299 = scmp.eq.s32.totalorder %s27, 0
      %p300 = por %p298, %p299
      %p301 = scmp.ne.s32.totalorder %s289, %s290
      %p302 = scmp.eq.s32.totalorder %s28, 1
      %p303 = por %p301, %p302
      %p305 = scmp.ne.s32.totalorder %s290, %s304
      %p306 = scmp.eq.s32.totalorder %s28, 0
      %p307 = por %p305, %p306
      %s308 = ssub.s32 %s22, %s29
      %p309 = scmp.eq.s32.totalorder %s308, 0
      %s311 = sadd.s32 %s310, 1
      %s312 = scalar_select %p309, %s310, %s311
      %p315 = pneg %p309
      %p316 = scmp.eq.s32.totalorder %s22, 1
      %p317 = por %p315, %p316
      %p318 = scmp.ne.s32.totalorder %s310, %s313
      %p319 = scmp.eq.s32.totalorder %s22, 0
      %p320 = por %p318, %p319
      %p321 = scmp.ne.s32.totalorder %s310, %s313
      %p322 = scmp.eq.s32.totalorder %s27, 1
      %p323 = por %p321, %p322
      %p324 = scmp.ne.s32.totalorder %s313, %s314
      %p325 = scmp.eq.s32.totalorder %s27, 0
      %p326 = por %p324, %p325
      %p327 = scmp.ne.s32.totalorder %s313, %s314
      %p328 = scmp.eq.s32.totalorder %s28, 1
      %p329 = por %p327, %p328
      %p331 = scmp.ne.s32.totalorder %s314, %s330
      %p332 = scmp.eq.s32.totalorder %s28, 0
      %p333 = por %p331, %p332
      %p334 = scmp.le.s32.totalorder 1, %s22
      %p335 = scmp.lt.s32.totalorder %s22, 3
      %p336 = pnand %p334, %p335
      %p337 = pneg %p336
      // Predicated region
      $region9: #{tpu_custom_call.1} parent=5 // pred_check
        _
      $region10: #{tpu_custom_call.1} parent=5 // pred_check_branch
        %339 = sbr.rel (%p336) target = $region12
      $region11: #{tpu_custom_call.1} parent=5 // pred_region
        %s340 = ssub.s32 %s22, 1
        // Predicated region
        $region13: #{tpu_custom_call.1} parent=11 // pred_check
          %p341 = pneg %p69
        $region14: #{tpu_custom_call.1} parent=11 // pred_check_branch
          %343 = sbr.rel (%p341) target = $region16
        $region15: #{tpu_custom_call.1} parent=11 // pred_region
          _
        $region16: #{tpu_custom_call.1} parent=11 // pred_fallthru
          _
        // Predicated region
        $region17: #{tpu_custom_call.1} parent=11 // pred_check
          %p344 = pneg %p90
        $region18: #{tpu_custom_call.1} parent=11 // pred_check_branch
          %346 = sbr.rel (%p344) target = $region20
        $region19: #{tpu_custom_call.1} parent=11 // pred_region
          _
        $region20: #{tpu_custom_call.1} parent=11 // pred_fallthru
          _
        // Predicated region
        $region21: #{tpu_custom_call.1} parent=11 // pred_check
          %p347 = pneg %p111
        $region22: #{tpu_custom_call.1} parent=11 // pred_check_branch
          %349 = sbr.rel (%p347) target = $region24
        $region23: #{tpu_custom_call.1} parent=11 // pred_region
          _
        $region24: #{tpu_custom_call.1} parent=11 // pred_fallthru
          _
        // Predicated region
        $region25: #{tpu_custom_call.1} parent=11 // pred_check
          %p350 = pneg %p132
        $region26: #{tpu_custom_call.1} parent=11 // pred_check_branch
          %352 = sbr.rel (%p350) target = $region28
        $region27: #{tpu_custom_call.1} parent=11 // pred_region
          _
        $region28: #{tpu_custom_call.1} parent=11 // pred_fallthru
          _
        // Predicated region
        $region29: #{tpu_custom_call.1} parent=11 // pred_check
          %p353 = pneg %p153
        $region30: #{tpu_custom_call.1} parent=11 // pred_check_branch
          %355 = sbr.rel (%p353) target = $region32
        $region31: #{tpu_custom_call.1} parent=11 // pred_region
          _
        $region32: #{tpu_custom_call.1} parent=11 // pred_fallthru
          _
        // Predicated region
        $region33: #{tpu_custom_call.1} parent=11 // pred_check
          %p356 = pneg %p174
        $region34: #{tpu_custom_call.1} parent=11 // pred_check_branch
          %358 = sbr.rel (%p356) target = $region36
        $region35: #{tpu_custom_call.1} parent=11 // pred_region
          _
        $region36: #{tpu_custom_call.1} parent=11 // pred_fallthru
          _
        // Predicated region
        $region37: #{tpu_custom_call.1} parent=11 // pred_check
          %p359 = pneg %p195
        $region38: #{tpu_custom_call.1} parent=11 // pred_check_branch
          %361 = sbr.rel (%p359) target = $region40
        $region39: #{tpu_custom_call.1} parent=11 // pred_region
          _
        $region40: #{tpu_custom_call.1} parent=11 // pred_fallthru
          _
        // Predicated region
        $region41: #{tpu_custom_call.1} parent=11 // pred_check
          %p362 = pneg %p216
        $region42: #{tpu_custom_call.1} parent=11 // pred_check_branch
          %364 = sbr.rel (%p362) target = $region44
        $region43: #{tpu_custom_call.1} parent=11 // pred_region
          _
        $region44: #{tpu_custom_call.1} parent=11 // pred_fallthru
          _
        // Predicated region
        $region45: #{tpu_custom_call.1} parent=11 // pred_check
          %p365 = pneg %p237
        $region46: #{tpu_custom_call.1} parent=11 // pred_check_branch
          %367 = sbr.rel (%p365) target = $region48
        $region47: #{tpu_custom_call.1} parent=11 // pred_region
          _
        $region48: #{tpu_custom_call.1} parent=11 // pred_fallthru
          _
        // Predicated region
        $region49: #{tpu_custom_call.1} parent=11 // pred_check
          %p368 = pneg %p258
        $region50: #{tpu_custom_call.1} parent=11 // pred_check_branch
          %370 = sbr.rel (%p368) target = $region52
        $region51: #{tpu_custom_call.1} parent=11 // pred_region
          _
        $region52: #{tpu_custom_call.1} parent=11 // pred_fallthru
          _
        // Predicated region
        $region53: #{tpu_custom_call.1} parent=11 // pred_check
          %p371 = pneg %p279
        $region54: #{tpu_custom_call.1} parent=11 // pred_check_branch
          %373 = sbr.rel (%p371) target = $region56
        $region55: #{tpu_custom_call.1} parent=11 // pred_region
          _
        $region56: #{tpu_custom_call.1} parent=11 // pred_fallthru
          _
        // Predicated region
        $region57: #{tpu_custom_call.1} parent=11 // pred_check
          %p374 = pneg %p300
        $region58: #{tpu_custom_call.1} parent=11 // pred_check_branch
          %376 = sbr.rel (%p374) target = $region60
        $region59: #{tpu_custom_call.1} parent=11 // pred_region
          _
        $region60: #{tpu_custom_call.1} parent=11 // pred_fallthru
          _
      $region12: #{tpu_custom_call.1} parent=5 // pred_fallthru
        _
      %p377 = scmp.lt.s32.totalorder %s22, 2
      // Predicated region
      $region61: #{tpu_custom_call.1} parent=5 // pred_check
        %p378 = pneg %p377
      $region62: #{tpu_custom_call.1} parent=5 // pred_check_branch
        %380 = sbr.rel (%p378) target = $region64
      $region63: #{tpu_custom_call.1} parent=5 // pred_region
        // Predicated region
        $region65: #{tpu_custom_call.1} parent=63 // pred_check
          %p381 = pneg %p42
        $region66: #{tpu_custom_call.1} parent=63 // pred_check_branch
          %383 = sbr.rel (%p381) target = $region68
        $region67: #{tpu_custom_call.1} parent=63 // pred_region
          %p384 = scmp.lt.s32.totalorder %s22, 1
          %s385 = scalar_select %p384, %s22, 1
          %s386 = smul.addr %s385, 2
          %s387 = smul.addr %s386, 8
          %s388 = scalar_lea.vmem %s0, %s387
        $region68: #{tpu_custom_call.1} parent=63 // pred_fallthru
          _
      $region64: #{tpu_custom_call.1} parent=5 // pred_fallthru
        _
      %p389 = scmp.le.s32.totalorder 1, %s22
      %p390 = scmp.lt.s32.totalorder %s22, 3
      %p391 = pnand %p389, %p390
      %p392 = pneg %p391
      // Predicated region
      $region69: #{tpu_custom_call.1} parent=5 // pred_check
        _
      $region70: #{tpu_custom_call.1} parent=5 // pred_check_branch
        %394 = sbr.rel (%p391) target = $region72
      $region71: #{tpu_custom_call.1} parent=5 // pred_region
        %s395 = ssub.s32 %s22, 1
        %p396 = scmp.lt.s32.totalorder %s27, 1
        %s397 = scalar_select %p396, %s27, 1
        %s398 = smul.addr %s397, 2
        %s399 = smul.addr %s398, 8
        %s400 = scalar_lea.vmem %s0, %s399
        %p401 = pneg %p48
        %p402 = pneg %p45
        %p403 = pneg %p69
        %p404 = pneg %p66
        %p405 = pneg %p90
        %p406 = pneg %p87
        %p407 = pneg %p111
        %p408 = pneg %p108
        %p409 = pneg %p132
        %p410 = pneg %p129
        %p411 = pneg %p153
        %p412 = pneg %p150
        %p413 = pneg %p174
        %p414 = pneg %p171
        %p415 = pneg %p195
        %p416 = pneg %p192
        %p417 = pneg %p216
        %p418 = pneg %p213
        %p419 = pneg %p237
        %p420 = pneg %p234
        %p421 = pneg %p258
        %p422 = pneg %p255
        %p423 = pneg %p279
        %p424 = pneg %p276
        %p425 = pneg %p300
        %p426 = pneg %p297
        %p427 = pneg %p326
        %p428 = pneg %p323
        %s429 = sand.u32 %s313, 1
        %s430 = scalar_lea.sflag [#allocation4], %s429
        %s431 = sand.u32 %s313, 1
        %s432 = smul.addr %s431, 16
        %s433 = scalar_lea.vmem [#allocation3], %s432
        %p434 = scmp.lt.s32.totalorder %s27, 1
        %s435 = scalar_select %p434, %s27, 1
        %s436 = smul.addr %s435, 2
        %s437 = smul.addr %s436, 8
        %s438 = scalar_lea.vmem %s0, %s437
        %vm439 = vcmask 31744
        %440 = vst.msk [vmem:[#allocation2] sm:$0xff] %vm439, 0.0
        %441 = vst.msk [vmem:[#allocation2 + $0x18] sm:$0xff] %vm439, 0.0
        %s442 = scalar_lea.vmem [#allocation2], 32
        %443 = vst.msk [vmem:[%s442] sm:$0xff] %vm439, 0.0
        %444 = vst.msk [vmem:[%s442 + $0x18] sm:$0xff] %vm439, 0.0
        %v445 = vld [vmem:[%s438] sm:$0xff]
        %v446 = vld [vmem:[%s438 + $0x8] sm:$0xff]
        %v447 = vld [vmem:[%s1] sm:$0xf]
        %v448 = vld [vmem:[%s2] sm:$0x1]
        %v450 = vlaneseq
        %v451 = vshrl.u32 %v450, 7
        %v452 = vsub.s32 0, %v451
        %v453 = vrot.slane %v448, %v452
        %v456 = vsel %vm439, %v445, 0
        %v459 = vsel %vm439, %v446, 0
        %vm461 = vcmask 1043456
        %v463 = vsel %vm461, %v447, 0
        %465 = vmatprep.subr.mxu0 0.0
        %466 = vmatpush1.msra.mxu0 %v463
        %467 = vmatprep.subr.mxu0 0.0
        %468 = vmatpush1.msra.mxu0 0.0
        %469 = vmatprep.subr.mxu0 0.0
        %470 = vmatpush1.msra.mxu0 0.0
        %471 = vmatprep.subr.mxu0 0.0
        %472 = vmatpush1.msra.mxu0 0.0
        %473 = vmatprep.subr.mxu0 0.0
        %474 = vmatpush1.msra.mxu0 0.0
        %475 = vmatprep.subr.mxu0 0.0
        %476 = vmatpush1.msra.mxu0 0.0
        %477 = vmatprep.subr.mxu0 0.0
        %478 = vmatpush1.msra.mxu0 0.0
        %479 = vmatprep.subr.mxu0 0.0
        %480 = vmatpush1.msra.mxu0 0.0
        %481 = vmatprep.subr.mxu0 0.0
        %482 = vmatpush1.msra.mxu0 0.0
        %483 = vmatprep.subr.mxu0 0.0
        %484 = vmatpush1.msra.mxu0 0.0
        %485 = vmatprep.subr.mxu0 0.0
        %486 = vmatpush1.msra.mxu0 0.0
        %487 = vmatprep.subr.mxu0 0.0
        %488 = vmatpush1.msra.mxu0 0.0
        %489 = vmatprep.subr.mxu0 0.0
        %490 = vmatpush1.msra.mxu0 0.0
        %491 = vmatprep.subr.mxu0 0.0
        %492 = vmatpush1.msra.mxu0 0.0
        %493 = vmatprep.subr.mxu0 0.0
        %494 = vmatpush1.msra.mxu0 0.0
        %495 = vmatprep.subr.mxu0 0.0
        %496 = vmatpush1.msra.mxu0 0.0
        %497 = vmatprep.subr.mxu0 0.0
        %498 = vmatpush1.msra.mxu0 0.0
        %499 = vmatprep.subr.mxu0 0.0
        %500 = vmatpush1.msra.mxu0 0.0
        %501 = vmatprep.subr.mxu0 0.0
        %502 = vmatpush1.msra.mxu0 0.0
        %503 = vmatprep.subr.mxu0 0.0
        %504 = vmatpush1.msra.mxu0 0.0
        %505 = vmatprep.subr.mxu0 0.0
        %506 = vmatpush1.msra.mxu0 0.0
        %507 = vmatprep.subr.mxu0 0.0
        %508 = vmatpush1.msra.mxu0 0.0
        %509 = vmatprep.subr.mxu0 0.0
        %510 = vmatpush1.msra.mxu0 0.0
        %511 = vmatprep.subr.mxu0 0.0
        %512 = vmatpush1.msra.mxu0 0.0
        %513 = vmatprep.subr.mxu0 0.0
        %514 = vmatpush1.msra.mxu0 0.0
        %515 = vmatprep.subr.mxu0 0.0
        %516 = vmatpush1.msra.mxu0 0.0
        %517 = vmatprep.subr.mxu0 0.0
        %518 = vmatpush1.msra.mxu0 0.0
        %519 = vmatprep.subr.mxu0 0.0
        %520 = vmatpush1.msra.mxu0 0.0
        %521 = vmatprep.subr.mxu0 0.0
        %522 = vmatpush1.msra.mxu0 0.0
        %523 = vmatprep.subr.mxu0 0.0
        %524 = vmatpush1.msra.mxu0 0.0
        %525 = vmatprep.subr.mxu0 0.0
        %526 = vmatpush1.msra.mxu0 0.0
        %527 = vmatprep.subr.mxu0 0.0
        %528 = vmatpush1.msra.mxu0 0.0
        %529 = vmatprep.mubr.f32.mxu0 0.0
        %530 = vmatmul.mubr.f32.gmra.mrb[0].mxu0 %v456
        %v531 = vpop.f32.mrb[0].mxu0
        %v532 = vadd.f32 %v453, %v531
        %v533 = vpop.f32.mrb[0].mxu0
        %534 = vmatprep.mubr.f32.mxu0 0.0
        %535 = vmatmul.mubr.f32.gmra.mrb[0].mxu0 %v459
        %v536 = vpop.f32.mrb[0].mxu0
        %v537 = vadd.f32 %v453, %v536
        %v538 = vpop.f32.mrb[0].mxu0
        %539 = vdwg.mxu0
        %540 = vst.msk [vmem:[#allocation2 + $0x8] sm:$0xff] %vm439, %v532
        %541 = vst.msk [vmem:[#allocation2 + $0x10] sm:$0xff] %vm439, %v537
        %544 = vrot.lane.b32.xlu0 %v532, 124
        %v545 = vpop.permute.xlu0 %544
        %546 = vrot.lane.b32.xlu0 %v537, 124
        %v547 = vpop.permute.xlu0 %546
        %550 = vst.msk [vmem:[%s442 + $0x8] sm:$0xff] %vm439, %v545
        %551 = vst.msk [vmem:[%s442 + $0x10] sm:$0xff] %vm439, %v547
        %v552 = vld [vmem:[%s3] sm:$0x7f]
        %v553 = vld [vmem:[%s4] sm:$0x1]
        %v554 = vld [vmem:[%s442 + $0x6] sm:$0xff]
        %v555 = vld [vmem:[%s442 + $0xe] sm:$0xff]
        %v556 = vld [vmem:[#allocation2 + $0x7] sm:$0xff]
        %v557 = vld [vmem:[#allocation2 + $0xf] sm:$0xff]
        %v558 = vld [vmem:[%s442 + $0x7] sm:$0xff]
        %v559 = vld [vmem:[%s442 + $0xf] sm:$0xff]
        %v560 = vld [vmem:[#allocation2 + $0x8] sm:$0xff]
        %v561 = vld [vmem:[#allocation2 + $0x10] sm:$0xff]
        %v562 = vld [vmem:[%s442 + $0x8] sm:$0xff]
        %v563 = vld [vmem:[%s442 + $0x10] sm:$0xff]
        %v564 = vld [vmem:[#allocation2 + $0x9] sm:$0xff]
        %v565 = vld [vmem:[#allocation2 + $0x11] sm:$0xff]
        %v566 = vld [vmem:[%s442 + $0x9] sm:$0xff]
        %v567 = vld [vmem:[%s442 + $0x11] sm:$0xff]
        %v568 = vld [vmem:[#allocation2 + $0xa] sm:$0xff]
        %v569 = vld [vmem:[#allocation2 + $0x12] sm:$0xff]
        %v570 = vlaneseq
        %v571 = vshrl.u32 %v570, 7
        %v572 = vsub.s32 0, %v571
        %v573 = vrot.slane %v552, %v572
        %v574 = vmul.f32 %v573, %v554
        %v575 = vmul.f32 %v573, %v555
        %v577 = vlaneseq
        %v578 = vshrl.u32 %v577, 7
        %v579 = vsub.s32 0, %v578
        %v580 = vrot.slane %v553, %v579
        %v582 = vadd.f32 %v580, %v574
        %v583 = vadd.f32 %v580, %v575
        %v584 = vlaneseq
        %v585 = vshrl.u32 %v584, 7
        %v586 = vsub.s32 1, %v585
        %v587 = vrot.slane %v552, %v586
        %v588 = vmul.f32 %v587, %v556
        %v589 = vmul.f32 %v587, %v557
        %v590 = vadd.f32 %v582, %v588
        %v591 = vadd.f32 %v583, %v589
        %v592 = vlaneseq
        %v593 = vshrl.u32 %v592, 7
        %v594 = vsub.s32 2, %v593
        %v595 = vrot.slane %v552, %v594
        %v596 = vmul.f32 %v595, %v558
        %v597 = vmul.f32 %v595, %v559
        %v598 = vadd.f32 %v590, %v596
        %v599 = vadd.f32 %v591, %v597
        %v600 = vlaneseq
        %v601 = vshrl.u32 %v600, 7
        %v602 = vsub.s32 3, %v601
        %v603 = vrot.slane %v552, %v602
        %v604 = vmul.f32 %v603, %v560
        %v605 = vmul.f32 %v603, %v561
        %v606 = vadd.f32 %v598, %v604
        %v607 = vadd.f32 %v599, %v605
        %v608 = vlaneseq
        %v609 = vshrl.u32 %v608, 7
        %v610 = vsub.s32 4, %v609
        %v611 = vrot.slane %v552, %v610
        %v612 = vmul.f32 %v611, %v562
        %v613 = vmul.f32 %v611, %v563
        %v614 = vadd.f32 %v606, %v612
        %v615 = vadd.f32 %v607, %v613
        %v616 = vlaneseq
        %v617 = vshrl.u32 %v616, 7
        %v618 = vsub.s32 5, %v617
        %v619 = vrot.slane %v552, %v618
        %v620 = vmul.f32 %v619, %v564
        %v621 = vmul.f32 %v619, %v565
        %v622 = vadd.f32 %v614, %v620
        %v623 = vadd.f32 %v615, %v621
        %v624 = vlaneseq
        %v625 = vshrl.u32 %v624, 7
        %v626 = vsub.s32 6, %v625
        %v627 = vrot.slane %v552, %v626
        %v628 = vmul.f32 %v627, %v566
        %v629 = vmul.f32 %v627, %v567
        %v630 = vadd.f32 %v622, %v628
        %v631 = vadd.f32 %v623, %v629
        %v632 = vmul.f32 %v573, %v556
        %v633 = vmul.f32 %v573, %v557
        %v634 = vadd.f32 %v580, %v632
        %v635 = vadd.f32 %v580, %v633
        %v636 = vmul.f32 %v587, %v558
        %v637 = vmul.f32 %v587, %v559
        %v638 = vadd.f32 %v634, %v636
        %v639 = vadd.f32 %v635, %v637
        %v640 = vmul.f32 %v595, %v560
        %v641 = vmul.f32 %v595, %v561
        %v642 = vadd.f32 %v638, %v640
        %v643 = vadd.f32 %v639, %v641
        %v644 = vmul.f32 %v603, %v562
        %v645 = vmul.f32 %v603, %v563
        %v646 = vadd.f32 %v642, %v644
        %v647 = vadd.f32 %v643, %v645
        %v648 = vmul.f32 %v611, %v564
        %v649 = vmul.f32 %v611, %v565
        %v650 = vadd.f32 %v646, %v648
        %v651 = vadd.f32 %v647, %v649
        %v652 = vmul.f32 %v619, %v566
        %v653 = vmul.f32 %v619, %v567
        %v654 = vadd.f32 %v650, %v652
        %v655 = vadd.f32 %v651, %v653
        %v656 = vmul.f32 %v627, %v568
        %v657 = vmul.f32 %v627, %v569
        %v658 = vadd.f32 %v654, %v656
        %v659 = vadd.f32 %v655, %v657
        %v660 = vsel %vm439, %v630, 0.0
        %661 = vadd.xlane.f32.xlu0 %v660
        %v662 = vpop.xlane.xlu0 %661
        %v663 = vsel %vm439, %v631, 0.0
        %664 = vadd.xlane.f32.xlu0 %v663
        %v665 = vpop.xlane.xlu0 %664
        %v666 = vsel %vm439, %v658, 0.0
        %667 = vadd.xlane.f32.xlu0 %v666
        %v668 = vpop.xlane.xlu0 %667
        %v669 = vsel %vm439, %v659, 0.0
        %670 = vadd.xlane.f32.xlu0 %v669
        %v671 = vpop.xlane.xlu0 %670
        %v672 = vrcp.pop 4.0
        %v673 = vmul.f32 %v662, %v672
        %v674 = vmul.f32 %v665, %v672
        %v675 = vmul.f32 %v668, %v672
        %v676 = vmul.f32 %v671, %v672
        %v677 = vsub.f32 %v630, %v673
        %v678 = vsub.f32 %v631, %v674
        %v679 = vsub.f32 %v658, %v675
        %v680 = vsub.f32 %v659, %v676
        %v681 = vmul.f32 %v677, %v677
        %v682 = vmul.f32 %v678, %v678
        %v683 = vmul.f32 %v679, %v679
        %v684 = vmul.f32 %v680, %v680
        %v685 = vsel %vm439, %v681, 0.0
        %686 = vadd.xlane.f32.xlu0 %v685
        %v687 = vpop.xlane.xlu0 %686
        %v688 = vsel %vm439, %v682, 0.0
        %689 = vadd.xlane.f32.xlu0 %v688
        %v690 = vpop.xlane.xlu0 %689
        %v691 = vsel %vm439, %v683, 0.0
        %692 = vadd.xlane.f32.xlu0 %v691
        %v693 = vpop.xlane.xlu0 %692
        %v694 = vsel %vm439, %v684, 0.0
        %695 = vadd.xlane.f32.xlu0 %v694
        %v696 = vpop.xlane.xlu0 %695
        %v697 = vmul.f32 %v687, %v672
        %v698 = vmul.f32 %v690, %v672
        %v699 = vmul.f32 %v693, %v672
        %v700 = vmul.f32 %v696, %v672
        %v701 = vadd.f32 %v697, 1e-06
        %v702 = vadd.f32 %v698, 1e-06
        %v703 = vadd.f32 %v699, 1e-06
        %v704 = vadd.f32 %v700, 1e-06
        %v705 = vrsqrt.pop %v701
        %v706 = vrsqrt.pop %v702
        %v707 = vrsqrt.pop %v703
        %v708 = vrsqrt.pop %v704
        %v709 = vmul.f32 %v677, %v705
        %v710 = vmul.f32 %v678, %v706
        %v711 = vmul.f32 %v679, %v707
        %v712 = vmul.f32 %v680, %v708
        %v713 = vld [vmem:[%s5] sm:$0x1]
        %v715 = vlaneseq
        %v716 = vshrl.u32 %v715, 7
        %v717 = vsub.s32 0, %v716
        %v718 = vrot.slane %v713, %v717
        %v720 = vmul.f32 %v709, %v718
        %v721 = vmul.f32 %v710, %v718
        %v722 = vmul.f32 %v711, %v718
        %v723 = vmul.f32 %v712, %v718
        %v724 = vld [vmem:[%s6] sm:$0x1]
        %v726 = vlaneseq
        %v727 = vshrl.u32 %v726, 7
        %v728 = vsub.s32 0, %v727
        %v729 = vrot.slane %v724, %v728
        %v731 = vadd.f32 %v720, %v729
        %v732 = vadd.f32 %v721, %v729
        %v733 = vadd.f32 %v722, %v729
        %v734 = vadd.f32 %v723, %v729
        %v735 = vld [vmem:[%s7] sm:$0xf]
        %v736 = vld [vmem:[%s8] sm:$0x1]
        %v738 = vlaneseq
        %v739 = vshrl.u32 %v738, 7
        %v740 = vsub.s32 0, %v739
        %v741 = vrot.slane %v736, %v740
        %v744 = vsel %vm439, %v731, 0
        %v747 = vsel %vm439, %v732, 0
        %v750 = vsel %vm439, %v733, 0
        %v753 = vsel %vm439, %v734, 0
        %v756 = vsel %vm461, %v735, 0
        %758 = vmatprep.subr.mxu0 0.0
        %759 = vmatpush1.msra.mxu0 %v756
        %760 = vmatprep.subr.mxu0 0.0
        %761 = vmatpush1.msra.mxu0 0.0
        %762 = vmatprep.subr.mxu0 0.0
        %763 = vmatpush1.msra.mxu0 0.0
        %764 = vmatprep.subr.mxu0 0.0
        %765 = vmatpush1.msra.mxu0 0.0
        %766 = vmatprep.subr.mxu0 0.0
        %767 = vmatpush1.msra.mxu0 0.0
        %768 = vmatprep.subr.mxu0 0.0
        %769 = vmatpush1.msra.mxu0 0.0
        %770 = vmatprep.subr.mxu0 0.0
        %771 = vmatpush1.msra.mxu0 0.0
        %772 = vmatprep.subr.mxu0 0.0
        %773 = vmatpush1.msra.mxu0 0.0
        %774 = vmatprep.subr.mxu0 0.0
        %775 = vmatpush1.msra.mxu0 0.0
        %776 = vmatprep.subr.mxu0 0.0
        %777 = vmatpush1.msra.mxu0 0.0
        %778 = vmatprep.subr.mxu0 0.0
        %779 = vmatpush1.msra.mxu0 0.0
        %780 = vmatprep.subr.mxu0 0.0
        %781 = vmatpush1.msra.mxu0 0.0
        %782 = vmatprep.subr.mxu0 0.0
        %783 = vmatpush1.msra.mxu0 0.0
        %784 = vmatprep.subr.mxu0 0.0
        %785 = vmatpush1.msra.mxu0 0.0
        %786 = vmatprep.subr.mxu0 0.0
        %787 = vmatpush1.msra.mxu0 0.0
        %788 = vmatprep.subr.mxu0 0.0
        %789 = vmatpush1.msra.mxu0 0.0
        %790 = vmatprep.subr.mxu0 0.0
        %791 = vmatpush1.msra.mxu0 0.0
        %792 = vmatprep.subr.mxu0 0.0
        %793 = vmatpush1.msra.mxu0 0.0
        %794 = vmatprep.subr.mxu0 0.0
        %795 = vmatpush1.msra.mxu0 0.0
        %796 = vmatprep.subr.mxu0 0.0
        %797 = vmatpush1.msra.mxu0 0.0
        %798 = vmatprep.subr.mxu0 0.0
        %799 = vmatpush1.msra.mxu0 0.0
        %800 = vmatprep.subr.mxu0 0.0
        %801 = vmatpush1.msra.mxu0 0.0
        %802 = vmatprep.subr.mxu0 0.0
        %803 = vmatpush1.msra.mxu0 0.0
        %804 = vmatprep.subr.mxu0 0.0
        %805 = vmatpush1.msra.mxu0 0.0
        %806 = vmatprep.subr.mxu0 0.0
        %807 = vmatpush1.msra.mxu0 0.0
        %808 = vmatprep.subr.mxu0 0.0
        %809 = vmatpush1.msra.mxu0 0.0
        %810 = vmatprep.subr.mxu0 0.0
        %811 = vmatpush1.msra.mxu0 0.0
        %812 = vmatprep.subr.mxu0 0.0
        %813 = vmatpush1.msra.mxu0 0.0
        %814 = vmatprep.subr.mxu0 0.0
        %815 = vmatpush1.msra.mxu0 0.0
        %816 = vmatprep.subr.mxu0 0.0
        %817 = vmatpush1.msra.mxu0 0.0
        %818 = vmatprep.subr.mxu0 0.0
        %819 = vmatpush1.msra.mxu0 0.0
        %820 = vmatprep.subr.mxu0 0.0
        %821 = vmatpush1.msra.mxu0 0.0
        %822 = vmatprep.mubr.f32.mxu0 0.0
        %823 = vmatmul.mubr.f32.gmra.mrb[0].mxu0 %v744
        %v824 = vpop.f32.mrb[0].mxu0
        %v825 = vadd.f32 %v741, %v824
        %v826 = vpop.f32.mrb[0].mxu0
        %827 = vmatprep.mubr.f32.mxu0 0.0
        %828 = vmatmul.mubr.f32.gmra.mrb[0].mxu0 %v747
        %v829 = vpop.f32.mrb[0].mxu0
        %v830 = vadd.f32 %v741, %v829
        %v831 = vpop.f32.mrb[0].mxu0
        %832 = vmatprep.mubr.f32.mxu0 0.0
        %833 = vmatmul.mubr.f32.gmra.mrb[0].mxu0 %v750
        %v834 = vpop.f32.mrb[0].mxu0
        %v835 = vadd.f32 %v741, %v834
        %v836 = vpop.f32.mrb[0].mxu0
        %837 = vmatprep.mubr.f32.mxu0 0.0
        %838 = vmatmul.mubr.f32.gmra.mrb[0].mxu0 %v753
        %v839 = vpop.f32.mrb[0].mxu0
        %v840 = vadd.f32 %v741, %v839
        %v841 = vpop.f32.mrb[0].mxu0
        %842 = vdwg.mxu0
        %v843 = vmul.f32 %v825, %v825
        %v844 = vmul.f32 %v830, %v830
        %v845 = vmul.f32 %v835, %v835
        %v846 = vmul.f32 %v840, %v840
        %v847 = vmul.f32 %v825, %v843
        %v848 = vmul.f32 %v830, %v844
        %v849 = vmul.f32 %v835, %v845
        %v850 = vmul.f32 %v840, %v846
        %v851 = vmul.f32 %v847, 0.044715
        %v852 = vmul.f32 %v848, 0.044715
        %v853 = vmul.f32 %v849, 0.044715
        %v854 = vmul.f32 %v850, 0.044715
        %v855 = vadd.f32 %v825, %v851
        %v856 = vadd.f32 %v830, %v852
        %v857 = vadd.f32 %v835, %v853
        %v858 = vadd.f32 %v840, %v854
        %v859 = vmul.f32 %v855, 0.7978846
        %v860 = vmul.f32 %v856, 0.7978846
        %v861 = vmul.f32 %v857, 0.7978846
        %v862 = vmul.f32 %v858, 0.7978846
        %v863 = vtanh.pop %v859
        %v864 = vtanh.pop %v860
        %v865 = vtanh.pop %v861
        %v866 = vtanh.pop %v862
        %v867 = vadd.f32 %v863, 1.0
        %v868 = vadd.f32 %v864, 1.0
        %v869 = vadd.f32 %v865, 1.0
        %v870 = vadd.f32 %v866, 1.0
        %v871 = vmul.f32 %v867, 0.5
        %v872 = vmul.f32 %v868, 0.5
        %v873 = vmul.f32 %v869, 0.5
        %v874 = vmul.f32 %v870, 0.5
        %v875 = vmul.f32 %v825, %v871
        %v876 = vmul.f32 %v830, %v872
        %v877 = vmul.f32 %v835, %v873
        %v878 = vmul.f32 %v840, %v874
        %v879 = vmul.f32 %v875, %v875
        %v880 = vmul.f32 %v876, %v876
        %v881 = vmul.f32 %v877, %v877
        %v882 = vmul.f32 %v878, %v878
        %vm883 = vcmask 130048
        %v884 = vsel %vm883, %v879, 0.0
        %v885 = vsel %vm883, %v880, 0.0
        %v886 = vadd.f32 %v884, %v885
        %v887 = vsel %vm883, %v881, 0.0
        %v888 = vadd.f32 %v886, %v887
        %v889 = vsel %vm883, %v882, 0.0
        %v890 = vadd.f32 %v888, %v889
        %v891 = vrot.slane %v890, 4
        %v892 = vadd.f32 %v890, %v891
        %v893 = vrot.slane %v892, 2
        %v894 = vadd.f32 %v892, %v893
        %v895 = vrot.slane %v894, 1
        %v896 = vadd.f32 %v894, %v895
        %v897 = vrsqrt.pop %v896
        %v898 = vmul.f32 %v896, %v897
        %vm899 = vcmp.eq.f32.partialorder %v896, inf
        %v900 = vsel %vm899, %v896, %v898
        %vm901 = vcmp.eq.f32.partialorder %v896, 0.0
        %v902 = vand.u32 %v896, 2147483648
        %v903 = vsel %vm901, %v902, %v900
        %v904 = vsel %vm883, %v903, 0.0
        %905 = vadd.xlane.f32.xlu0 %v904
        %v906 = vpop.xlane.xlu0 %905
        %v907 = vrcp.pop 16.0
        %v908 = vmul.f32 %v906, %v907
        %v909 = vadd.f32 %v908, 1e-06
        %v910 = vrcp.pop %v909
        %v911 = vmul.f32 %v903, %v910
        %v912 = vld [vmem:[%s9] sm:$0x1]
        %v913 = vmul.f32 %v875, %v911
        %v914 = vmul.f32 %v876, %v911
        %v915 = vmul.f32 %v877, %v911
        %v916 = vmul.f32 %v878, %v911
        %v918 = vlaneseq
        %v919 = vshrl.u32 %v918, 7
        %v920 = vsub.s32 0, %v919
        %v921 = vrot.slane %v912, %v920
        %v923 = vmul.f32 %v921, %v913
        %v924 = vmul.f32 %v921, %v914
        %v925 = vmul.f32 %v921, %v915
        %v926 = vmul.f32 %v921, %v916
        %v927 = vld [vmem:[%s10] sm:$0x1]
        %v929 = vlaneseq
        %v930 = vshrl.u32 %v929, 7
        %v931 = vsub.s32 0, %v930
        %v932 = vrot.slane %v927, %v931
        %v934 = vadd.f32 %v923, %v932
        %v935 = vadd.f32 %v924, %v932
        %v936 = vadd.f32 %v925, %v932
        %v937 = vadd.f32 %v926, %v932
        %v938 = vadd.f32 %v934, %v875
        %v939 = vadd.f32 %v935, %v876
        %v940 = vadd.f32 %v936, %v877
        %v941 = vadd.f32 %v937, %v878
        %942 = vrot.lane.b32.xlu0 %v532, 16
        %v943 = vpop.permute.xlu0 %942
        %944 = vrot.lane.b32.xlu0 %v537, 16
        %v945 = vpop.permute.xlu0 %944
        %946 = vrot.lane.b32.xlu0 %v545, 16
        %v947 = vpop.permute.xlu0 %946
        %948 = vrot.lane.b32.xlu0 %v547, 16
        %v949 = vpop.permute.xlu0 %948
        %v954 = vsel %vm883, %v938, %v943
        %v955 = vsel %vm883, %v939, %v945
        %v956 = vsel %vm883, %v940, %v947
        %v957 = vsel %vm883, %v941, %v949
        %v958 = vld [vmem:[%s11] sm:$0xff]
        %v959 = vld [vmem:[%s11 + $0x8] sm:$0xff]
        %v960 = vld [vmem:[%s11 + $0x10] sm:$0xf]
        %v961 = vld [vmem:[%s12] sm:$0x1]
        %v963 = vlaneseq
        %v964 = vshrl.u32 %v963, 7
        %v965 = vsub.s32 0, %v964
        %v966 = vrot.slane %v961, %v965
        %vm968 = vcmask 162816
        %v970 = vsel %vm968, %v954, 0
        %v973 = vsel %vm968, %v955, 0
        %v976 = vsel %vm968, %v956, 0
        %v979 = vsel %vm968, %v957, 0
        %v982 = vsel %vm461, %v960, 0
        %984 = vmatprep.subr.mxu0 0.0
        %985 = vmatpush1.msra.mxu0 %v958
        %986 = vmatprep.subr.mxu0 0.0
        %987 = vmatpush1.msra.mxu0 %v959
        %988 = vmatprep.subr.mxu0 0.0
        %989 = vmatpush1.msra.mxu0 %v982
        %990 = vmatprep.subr.mxu0 0.0
        %991 = vmatpush1.msra.mxu0 0.0
        %992 = vmatprep.subr.mxu0 0.0
        %993 = vmatpush1.msra.mxu0 0.0
        %994 = vmatprep.subr.mxu0 0.0
        %995 = vmatpush1.msra.mxu0 0.0
        %996 = vmatprep.subr.mxu0 0.0
        %997 = vmatpush1.msra.mxu0 0.0
        %998 = vmatprep.subr.mxu0 0.0
        %999 = vmatpush1.msra.mxu0 0.0
        %1000 = vmatprep.subr.mxu0 0.0
        %1001 = vmatpush1.msra.mxu0 0.0
        %1002 = vmatprep.subr.mxu0 0.0
        %1003 = vmatpush1.msra.mxu0 0.0
        %1004 = vmatprep.subr.mxu0 0.0
        %1005 = vmatpush1.msra.mxu0 0.0
        %1006 = vmatprep.subr.mxu0 0.0
        %1007 = vmatpush1.msra.mxu0 0.0
        %1008 = vmatprep.subr.mxu0 0.0
        %1009 = vmatpush1.msra.mxu0 0.0
        %1010 = vmatprep.subr.mxu0 0.0
        %1011 = vmatpush1.msra.mxu0 0.0
        %1012 = vmatprep.subr.mxu0 0.0
        %1013 = vmatpush1.msra.mxu0 0.0
        %1014 = vmatprep.subr.mxu0 0.0
        %1015 = vmatpush1.msra.mxu0 0.0
        %1016 = vmatprep.subr.mxu0 0.0
        %1017 = vmatpush1.msra.mxu0 0.0
        %1018 = vmatprep.subr.mxu0 0.0
        %1019 = vmatpush1.msra.mxu0 0.0
        %1020 = vmatprep.subr.mxu0 0.0
        %1021 = vmatpush1.msra.mxu0 0.0
        %1022 = vmatprep.subr.mxu0 0.0
        %1023 = vmatpush1.msra.mxu0 0.0
        %1024 = vmatprep.subr.mxu0 0.0
        %1025 = vmatpush1.msra.mxu0 0.0
        %1026 = vmatprep.subr.mxu0 0.0
        %1027 = vmatpush1.msra.mxu0 0.0
        %1028 = vmatprep.subr.mxu0 0.0
        %1029 = vmatpush1.msra.mxu0 0.0
        %1030 = vmatprep.subr.mxu0 0.0
        %1031 = vmatpush1.msra.mxu0 0.0
        %1032 = vmatprep.subr.mxu0 0.0
        %1033 = vmatpush1.msra.mxu0 0.0
        %1034 = vmatprep.subr.mxu0 0.0
        %1035 = vmatpush1.msra.mxu0 0.0
        %1036 = vmatprep.subr.mxu0 0.0
        %1037 = vmatpush1.msra.mxu0 0.0
        %1038 = vmatprep.subr.mxu0 0.0
        %1039 = vmatpush1.msra.mxu0 0.0
        %1040 = vmatprep.subr.mxu0 0.0
        %1041 = vmatpush1.msra.mxu0 0.0
        %1042 = vmatprep.subr.mxu0 0.0
        %1043 = vmatpush1.msra.mxu0 0.0
        %1044 = vmatprep.subr.mxu0 0.0
        %1045 = vmatpush1.msra.mxu0 0.0
        %1046 = vmatprep.subr.mxu0 0.0
        %1047 = vmatpush1.msra.mxu0 0.0
        %1048 = vmatprep.mubr.f32.mxu0 0.0
        %1049 = vmatmul.mubr.f32.gmra.mrb[0].mxu0 %v970
        %v1050 = vpop.f32.mrb[0].mxu0
        %v1051 = vadd.f32 %v966, %v1050
        %v1052 = vpop.f32.mrb[0].mxu0
        %1053 = vmatprep.mubr.f32.mxu0 0.0
        %1054 = vmatmul.mubr.f32.gmra.mrb[0].mxu0 %v973
        %v1055 = vpop.f32.mrb[0].mxu0
        %v1056 = vadd.f32 %v966, %v1055
        %v1057 = vpop.f32.mrb[0].mxu0
        %1058 = vmatprep.mubr.f32.mxu0 0.0
        %1059 = vmatmul.mubr.f32.gmra.mrb[0].mxu0 %v976
        %v1060 = vpop.f32.mrb[0].mxu0
        %v1061 = vadd.f32 %v966, %v1060
        %v1062 = vpop.f32.mrb[0].mxu0
        %1063 = vmatprep.mubr.f32.mxu0 0.0
        %1064 = vmatmul.mubr.f32.gmra.mrb[0].mxu0 %v979
        %v1065 = vpop.f32.mrb[0].mxu0
        %v1066 = vadd.f32 %v966, %v1065
        %v1067 = vpop.f32.mrb[0].mxu0
        %1068 = vdwg.mxu0
        %1071 = vrot.lane.b32.xlu0 %v1061, 8
        %v1072 = vpop.permute.xlu0 %1071
        %1073 = vrot.lane.b32.xlu0 %v1066, 8
        %v1074 = vpop.permute.xlu0 %1073
        %vm1077 = vcmask 64512
        %v1078 = vsel %vm1077, %v1051, %v1072
        %v1079 = vsel %vm1077, %v1056, %v1074
        %1080 = vst.msk [vmem:[%s433] sm:$0xff] %vm883, %v1078
        %1081 = vst.msk [vmem:[%s433 + $0x8] sm:$0xff] %vm883, %v1079
        %s1082 = sand.u32 %s313, 1
        %s1083 = scalar_lea.sflag [#allocation4], %s1082
        %s1084 = sand.u32 %s313, 1
        %s1085 = smul.addr %s1084, 16
        %s1086 = scalar_lea.vmem [#allocation3], %s1085
        // Predicated region
        $region73: #{tpu_custom_call.1} parent=71 // pred_check
          %p1087 = pneg %p323
        $region74: #{tpu_custom_call.1} parent=71 // pred_check_branch
          %1089 = sbr.rel (%p1087) target = $region76
        $region75: #{tpu_custom_call.1} parent=71 // pred_region
          %s1091 = ssub.s32 256, 256
          %1092 = vsyncadd %s1083, %s1091
          %s1093 = smul.addr %s27, 2
          %s1094 = smul.addr %s1093, 128
          %s1095 = scalar_lea.hbm %s13, %s1094
          %s1096 = sshll.u32 %s1086, 4
          %s1097 = int_to_ptr.vmem [resolvable:$true] %s1096
          %1102 = dma.vmem_to_hbm [thread:$0]  %s1097, 256, %s1095, %s1083, 128, 128, 8
        $region76: #{tpu_custom_call.1} parent=71 // pred_fallthru
          _
      $region72: #{tpu_custom_call.1} parent=5 // pred_fallthru
        _
      %p1103 = scmp.le.s32.totalorder 2, %s22
      // Predicated region
      $region77: #{tpu_custom_call.1} parent=5 // pred_check
        %p1104 = pneg %p1103
      $region78: #{tpu_custom_call.1} parent=5 // pred_check_branch
        %1106 = sbr.rel (%p1104) target = $region80
      $region79: #{tpu_custom_call.1} parent=5 // pred_region
        %s1107 = ssub.s32 %s22, 2
        // Predicated region
        $region81: #{tpu_custom_call.1} parent=79 // pred_check
          %p1108 = pneg %p329
        $region82: #{tpu_custom_call.1} parent=79 // pred_check_branch
          %1110 = sbr.rel (%p1108) target = $region84
        $region83: #{tpu_custom_call.1} parent=79 // pred_region
          %s1111 = sand.u32 %s314, 1
          %s1112 = scalar_lea.sflag [#allocation4], %s1111
          %s1113 = sand.u32 %s314, 1
          %s1114 = smul.addr %s1113, 16
          %s1115 = scalar_lea.vmem [#allocation3], %s1114
          %1116 = dma.done %s1112, 256
        $region84: #{tpu_custom_call.1} parent=79 // pred_fallthru
          _
      $region80: #{tpu_custom_call.1} parent=5 // pred_fallthru
        _
    $region6: #{tpu_custom_call.1} parent=1 // loop_footer
      %s26 = sadd.s32 1, %s22
    $region7: #{tpu_custom_call.1} parent=1 // loop_footer_branch
      %21 = sbr.rel target = $region3
    $region8: #{tpu_custom_call.1} parent=1 // loop_exit
      _
    %1117 = vsyncpa [#allocation4], 1
    %s1118 = scalar_lea.sflag [#allocation4], 1
    %1119 = vsyncpa %s1118, 1

</llo_original>
